<compile_context>
chip_gen: v5e
topology: v5e:2x2
jax: 0.10.0
libtpu: 0.0.40
codegen_flags: <defaults>
</compile_context>

<pallas_src>
import functools
import numpy as np

import jax
import jax.numpy as jnp
from jax.experimental import pallas as pl
from jax.experimental.pallas import tpu as pltpu

# ----------------------------- model dimensions -----------------------------
B, S, H = 2, 16, 128          # batch, sequence, hidden
NH, HD = 4, 32                # heads, head_dim  (NH*HD == H)
MLP = 4 * H                   # mlp hidden (mlp_ratio = 4)
EPS = 1e-6
NEG = -1e30                   # additive mask for cross-batch score blocks


# ------------------------------ Pallas kernel -------------------------------
def _single_stream_block_kernel(x_ref, vec_ref, cos_ref, sin_ref, pbd_ref,
                                hm_ref, repk_ref, colmask_ref, bias_ref,
                                wmod_ref, bmod_ref, w1_ref, b1_ref,
                                qs_ref, ks_ref, w2a_ref, w2m_ref, b2_ref,
                                out_ref, *, BB, S, H, NH, HD, MLP):
    f32, bf16 = jnp.float32, jnp.bfloat16
    R = BB * S                                   # query rows (b, s)

    x = x_ref[...]                               # (BB, S, H) f32
    vec = vec_ref[...].reshape(BB, H)            # (BB, H)

    # ---- modulation: Linear(silu(vec)) -> shift, scale, gate ----
    mod = jnp.dot(jax.nn.silu(vec).astype(bf16), wmod_ref[...],
                  preferred_element_type=f32) + bmod_ref[...]      # (BB, 3H)
    shift = mod[:, 0 * H:1 * H][:, None, :]
    scale = mod[:, 1 * H:2 * H][:, None, :]
    gate = mod[:, 2 * H:3 * H]                                     # (BB, H)

    # ---- pre-norm LayerNorm (no affine) + modulation (f32) ----
    mu = jnp.mean(x, axis=-1, keepdims=True)
    var = jnp.mean(jnp.square(x - mu), axis=-1, keepdims=True)
    x_norm = (x - mu) * jax.lax.rsqrt(var + EPS)
    x_mod = ((1.0 + scale) * x_norm + shift).reshape(R, H)         # (R, H)

    # ---- linear1: qkv (3H) + mlp (MLP), bf16 MXU, f32 accumulate ----
    h = jnp.dot(x_mod.astype(bf16), w1_ref[...],
                preferred_element_type=f32) + b1_ref[...]          # (R, 3H+MLP)
    q = h[:, 0 * H:1 * H]
    k = h[:, 1 * H:2 * H]
    v = h[:, 2 * H:3 * H]
    mlp = h[:, 3 * H:]

    hm = hm_ref[...]        # (H,H) bf16 block-diag ones/HD  -> per-head mean(t*t)
    pbd = pbd_ref[...]      # (H,H) bf16 block-diag interleaved-rotation matrix
    cos = cos_ref[...]      # (R, H) f32
    sin = sin_ref[...]

    def rms_rope(t, sc):
        # full-width per-head RMSNorm via block-diagonal mean matmul
        m = jnp.dot((t * t).astype(bf16), hm, preferred_element_type=f32)
        tn = t * jax.lax.rsqrt(m + EPS) * sc
        # full-width interleaved RoPE: rot(x) = x @ P_blockdiag
        rot = jnp.dot(tn.astype(bf16), pbd, preferred_element_type=f32)
        return tn * cos + rot * sin

    q16 = rms_rope(q, qs_ref[...]).astype(bf16)   # qs already folds 1/sqrt(HD)
    k16 = rms_rope(k, ks_ref[...]).astype(bf16)
    v16 = v.astype(bf16)

    # ---- block-packed attention: every (batch, head) block in one pass ----
    # Packed column index c' = (b, h, s'); constants built on host:
    #   repk    (C, R): 0/1 row replication, row (b,h,s') <- k/v row (b, s')
    #   colmask (C, H): 1 on head-h column block of row (b,h,s'), else 0
    #   bias    (R, C): 0 where column batch == row batch, NEG otherwise
    repk = repk_ref[...]                                            # bf16
    colmask_f = colmask_ref[...]                                    # f32
    kbd = (jnp.dot(repk, k16, preferred_element_type=f32) * colmask_f).astype(bf16)
    vbd = (jnp.dot(repk, v16, preferred_element_type=f32) * colmask_f).astype(bf16)

    # one K=128 score matmul covering all (batch, head) blocks: (R, C)
    sc = jax.lax.dot_general(q16, kbd, (((1,), (1,)), ((), ())),
                             preferred_element_type=f32)
    sc = sc + bias_ref[...]
    # one 128-lane row max (per-row constant shift cancels in softmax)
    p = jnp.exp(sc - jnp.max(sc, axis=-1, keepdims=True))
    p16 = p.astype(bf16)

    num = jnp.dot(p16, vbd, preferred_element_type=f32)             # (R, H)
    den = jnp.dot(p16, colmask_f.astype(bf16),
                  preferred_element_type=f32)                       # per-head sums
    attn = num * pl.reciprocal(den, approx=True)                    # (R, H)

    # ---- linear2: single K=128 attention matmul + mlp branch (no concat) ----
    out = (jnp.dot(attn.astype(bf16), w2a_ref[...], preferred_element_type=f32)
           + jnp.dot(jax.nn.gelu(mlp, approximate=True).astype(bf16), w2m_ref[...],
                     preferred_element_type=f32)
           + b2_ref[...])                                           # (R, H)

    for b in range(BB):                       # static, BB == 2: residual + gate
        out_ref[b] = x[b] + gate[b:b + 1, :] * out[b * S:(b + 1) * S]


# ----------------------------- wrapper / glue --------------------------------
def make_rope_matrix():
    """Per-head interleaved-rotation matrix (HD, HD): rot(x)=x@P."""
    P = np.zeros((HD, HD), np.float32)
    for i in range(HD // 2):
        P[2 * i + 1, 2 * i] = -1.0     # rot(x)[2i]   = -x[2i+1]
        P[2 * i, 2 * i + 1] = 1.0      # rot(x)[2i+1] =  x[2i]
    return P


def make_flux_pe():
    """Flux-style rotary table: (1, 1, S, HD//2, 2, 2)."""
    pos = jnp.arange(S, dtype=jnp.float32)
    freqs = 1.0 / (10000.0 ** (jnp.arange(0, HD, 2, dtype=jnp.float32) / HD))
    ang = pos[:, None] * freqs[None, :]
    c, s = jnp.cos(ang), jnp.sin(ang)
    pe = jnp.stack([jnp.stack([c, -s], -1), jnp.stack([s, c], -1)], -2)
    return pe[None, None]


def pe_to_cos_sin(pe):
    c = pe[0, 0, :, :, 0, 0]
    s = pe[0, 0, :, :, 1, 0]
    return jnp.repeat(c, 2, axis=-1), jnp.repeat(s, 2, axis=-1)   # (S, HD)


def make_attention_constants():
    """Block-packing constants for the batched/head-packed attention."""
    C, R = B * NH * S, B * S
    rows = np.arange(C)
    rb = rows // (NH * S)          # batch of packed row
    rh = (rows // S) % NH          # head of packed row
    rs = rows % S                  # seq position of packed row
    repk = np.zeros((C, R), np.float32)
    repk[rows, rb * S + rs] = 1.0
    colmask = (rh[:, None] == (np.arange(H) // HD)[None, :]).astype(np.float32)
    qb = np.arange(R) // S         # batch of query row
    bias = np.where(qb[:, None] == rb[None, :], 0.0, NEG).astype(np.float32)
    return repk, colmask, bias


def _prepare_consts(params, pe):
    wmod, bmod, w1, b1, qs, ks, w2, b2 = params
    bf16 = jnp.bfloat16
    cos_hd, sin_hd = pe_to_cos_sin(pe)                      # (S, HD)
    cos_f = jnp.tile(cos_hd, (B, NH))                       # (B*S, H)
    sin_f = jnp.tile(sin_hd, (B, NH))
    pbd = jnp.asarray(np.kron(np.eye(NH, dtype=np.float32), make_rope_matrix()), bf16)
    hm = jnp.asarray(np.kron(np.eye(NH, dtype=np.float32),
                             np.full((HD, HD), 1.0 / HD, np.float32)), bf16)
    repk, colmask, bias = make_attention_constants()
    sm = float(1.0 / np.sqrt(HD))
    return (cos_f, sin_f, pbd, hm,
            jnp.asarray(repk, bf16),
            jnp.asarray(colmask, jnp.float32),
            jnp.asarray(bias, jnp.float32),
            wmod.astype(bf16), bmod,
            w1.astype(bf16), b1,
            jnp.tile(qs, (1, NH)) * sm,      # fold sm_scale into q scale
            jnp.tile(ks, (1, NH)),
            w2[:H].astype(bf16),             # w2_attn
            w2[H:].astype(bf16),             # w2_mlp
            b2)


def single_stream_block_pallas(x, vec, consts):
    (cos_f, sin_f, pbd, hm, repk, colmask, bias, wmod, bmod, w1, b1,
     qs_f, ks_f, w2a, w2m, b2) = consts
    vec3 = vec.reshape(B, 1, H)
    R, C = B * S, B * NH * S
    kern = functools.partial(_single_stream_block_kernel,
                             BB=B, S=S, H=H, NH=NH, HD=HD, MLP=MLP)

    def full(shp):
        return pl.BlockSpec(shp, lambda i, _n=len(shp): (0,) * _n)

    return pl.pallas_call(
        kern,
        out_shape=jax.ShapeDtypeStruct((B, S, H), jnp.float32),
        grid_spec=pltpu.PrefetchScalarGridSpec(
            num_scalar_prefetch=0,
            grid=(1,),                       # batch folded into one grid step
            in_specs=[
                full((B, S, H)),             # x
                full((B, 1, H)),             # vec
                full((R, H)),                # cos (tiled)
                full((R, H)),                # sin (tiled)
                full((H, H)),                # rope block-diag (bf16)
                full((H, H)),                # head-mean block-diag (bf16)
                full((C, R)),                # repk row-replication (bf16)
                full((C, H)),                # head column mask (f32)
                full((R, C)),                # cross-batch additive bias (f32)
                full((H, 3 * H)),            # w_mod (bf16)
                full((1, 3 * H)),            # b_mod
                full((H, 3 * H + MLP)),      # w1 (bf16)
                full((1, 3 * H + MLP)),      # b1
                full((1, H)),                # q_scale * sm
                full((1, H)),                # k_scale
                full((H, H)),                # w2_attn (bf16)
                full((MLP, H)),              # w2_mlp (bf16)
                full((1, H)),                # b2
            ],
            out_specs=full((B, S, H)),
        ),
        compiler_params=pltpu.CompilerParams(
            dimension_semantics=("arbitrary",)),
    )(x, vec3, cos_f, sin_f, pbd, hm, repk, colmask, bias,
      wmod, bmod, w1, b1, qs_f, ks_f, w2a, w2m, b2)


# --------------------------- pure-JAX reference ------------------------------
def single_stream_block_ref(x, vec, cos, sin, P, params):
    wmod, bmod, w1, b1, qs, ks, w2, b2 = params
    mod = jax.nn.silu(vec) @ wmod + bmod
    shift, scale, gate = [t[:, None, :] for t in jnp.split(mod, 3, axis=-1)]
    mu = jnp.mean(x, -1, keepdims=True)
    var = jnp.mean((x - mu) ** 2, -1, keepdims=True)
    x_mod = (1.0 + scale) * ((x - mu) * jax.lax.rsqrt(var + EPS)) + shift
    h = x_mod @ w1 + b1
    heads = lambda t: t.reshape(B, S, NH, HD).transpose(0, 2, 1, 3)
    q, k, v = heads(h[..., :H]), heads(h[..., H:2 * H]), heads(h[..., 2 * H:3 * H])
    mlp = h[..., 3 * H:]
    rms = lambda t, sc: t * jax.lax.rsqrt(jnp.mean(t * t, -1, keepdims=True) + EPS) * sc[0]
    q, k = rms(q, qs), rms(k, ks)
    rope = lambda t: t * cos + jnp.einsum('bnsd,de->bnse', t, P) * sin
    q, k = rope(q), rope(k)
    s = jnp.einsum('bnqd,bnkd->bnqk', q, k) / (HD ** 0.5)
    a = jnp.einsum('bnqk,bnkd->bnqd', jax.nn.softmax(s, axis=-1), v)
    attn = a.transpose(0, 2, 1, 3).reshape(B, S, H)
    out = jnp.concatenate([attn, jax.nn.gelu(mlp, approximate=True)], -1) @ w2 + b2
    return x + gate * out


# ----------------------- HiddenStateTracker (host glue) ----------------------
class InMemoryCache:
    # TODO(synk): original DiskCache uses safetensors save_file/load_file on a
    # TemporaryDirectory (host disk I/O) — no Pallas equivalent; kept in memory.
    def __init__(self):
        self.items = []

    def append(self, data):
        self.items.append(data)

    def __len__(self):
        return len(self.items)

    def __getitem__(self, i):
        return self.items[i]


class HiddenStateTracker:
    """Wraps a (single-stream) block; when active, stores hidden states."""
    SAVE_EVERY = 19
    NEXT_SAVE_COUNTER = 0
    hidden_states: dict = {}
    active = False
    # TODO(synk): UploadThread / MergingUploadThread (background HF-hub uploads,
    # rate-limit retry loops) are host-side side effects with no Pallas equivalent.

    def __init__(self, block_apply, layer, is_master=None, store_input=None,
                 store_output=True):
        self.store_input = store_input if store_input is not None else layer == 0
        self.store_output = store_output
        self.wrapped_module = block_apply
        self.layer = layer
        self.is_master = is_master if is_master is not None else layer == 0
        self.is_double = False   # single-stream variant implemented here
        if layer not in self.hidden_states and self.store_input:
            self.hidden_states[layer] = InMemoryCache()
        if layer + 1 not in self.hidden_states and self.store_output:
            self.hidden_states[layer + 1] = InMemoryCache()

    def __call__(self, x, *, vec, pe):
        if self.is_master:
            HiddenStateTracker.active = HiddenStateTracker.NEXT_SAVE_COUNTER == 0
            HiddenStateTracker.NEXT_SAVE_COUNTER = (
                HiddenStateTracker.NEXT_SAVE_COUNTER + 1) % HiddenStateTracker.SAVE_EVERY
        if HiddenStateTracker.active and self.store_input:
            self.hidden_states[self.layer].append({'x': x, 'vec': vec, 'pe': pe})
        out = self.wrapped_module(x, vec, pe)
        if HiddenStateTracker.active and self.store_output:
            self.hidden_states[self.layer + 1].append({'x': out, 'vec': vec, 'pe': pe})
        return out


# ---------------------------------- main -------------------------------------
def make_params(key):
    ks = jax.random.split(key, 8)
    w = lambda k, shp, s=0.02: (jax.random.normal(k, shp, jnp.float32) * s)
    wmod = w(ks[0], (H, 3 * H))
    bmod = w(ks[1], (1, 3 * H), 0.05)
    w1 = w(ks[2], (H, 3 * H + MLP))
    b1 = w(ks[3], (1, 3 * H + MLP), 0.05)
    qs = 1.0 + w(ks[4], (1, HD), 0.05)
    kq = 1.0 + w(ks[5], (1, HD), 0.05)
    w2 = w(ks[6], (H + MLP, H))
    b2 = w(ks[7], (1, H), 0.05)
    return (wmod, bmod, w1, b1, qs, kq, w2, b2)


if __name__ == "__main__":
    key = jax.random.PRNGKey(0)
    kx, kv, kp = jax.random.split(key, 3)

    x = jax.random.normal(kx, (B, S, H), jnp.float32)
    vec = jax.random.normal(kv, (B, H), jnp.float32)
    pe = make_flux_pe()
    params = make_params(kp)

    consts = _prepare_consts(params, pe)
    block_apply = lambda x_, vec_, pe_: single_stream_block_pallas(x_, vec_, consts)

    tracker = HiddenStateTracker(block_apply, layer=0)   # master, stores in & out
    out = tracker(x, vec=vec, pe=pe)
    out = jax.block_until_ready(out)

    cos, sin = pe_to_cos_sin(pe)
    P_ref = jnp.asarray(make_rope_matrix())
    ref = single_stream_block_ref(x, vec, cos, sin, P_ref, params)
    err = float(jnp.max(jnp.abs(out - ref)))
    assert out.shape == (B, S, H) and out.dtype == jnp.float32
    assert bool(jnp.all(jnp.isfinite(out)))
    # bf16 weights/operands + approx reciprocal vs a pure-f32 reference.
    assert err < 2e-2, f"mismatch vs reference: {err}"
    assert len(HiddenStateTracker.hidden_states[0]) == 1     # input stored
    assert len(HiddenStateTracker.hidden_states[1]) == 1     # output stored

    print("KERNEL_OK")
</pallas_src>

<mosaic_0001>
module attributes {stable_mosaic.version = 11 : i64} {
  func.func @_single_stream_block_kernel(%arg0: i32, %arg1: memref<2x16x128xf32, #tpu.memory_space<vmem>>, %arg2: memref<2x1x128xf32, #tpu.memory_space<vmem>>, %arg3: memref<32x128xf32, #tpu.memory_space<vmem>>, %arg4: memref<32x128xf32, #tpu.memory_space<vmem>>, %arg5: memref<128x128xbf16, #tpu.memory_space<vmem>>, %arg6: memref<128x128xbf16, #tpu.memory_space<vmem>>, %arg7: memref<128x32xbf16, #tpu.memory_space<vmem>>, %arg8: memref<128x128xf32, #tpu.memory_space<vmem>>, %arg9: memref<32x128xf32, #tpu.memory_space<vmem>>, %arg10: memref<128x384xbf16, #tpu.memory_space<vmem>>, %arg11: memref<1x384xf32, #tpu.memory_space<vmem>>, %arg12: memref<128x896xbf16, #tpu.memory_space<vmem>>, %arg13: memref<1x896xf32, #tpu.memory_space<vmem>>, %arg14: memref<1x128xf32, #tpu.memory_space<vmem>>, %arg15: memref<1x128xf32, #tpu.memory_space<vmem>>, %arg16: memref<128x128xbf16, #tpu.memory_space<vmem>>, %arg17: memref<512x128xbf16, #tpu.memory_space<vmem>>, %arg18: memref<1x128xf32, #tpu.memory_space<vmem>>, %arg19: memref<2x16x128xf32, #tpu.memory_space<vmem>>) attributes {dimension_semantics = [#tpu.dimension_semantics<arbitrary>], iteration_bounds = array<i64: 1>, scalar_prefetch = 0 : i64, scratch_operands = 0 : i64, tpu.core_type = #tpu.core_type<tc>, window_params = [{pipeline_mode = #tpu.pipeline_mode<synchronous>, transform_indices = @transform_0, window_bounds = array<i64: 2, 16, 128>}, {pipeline_mode = #tpu.pipeline_mode<synchronous>, transform_indices = @transform_1, window_bounds = array<i64: 2, 1, 128>}, {pipeline_mode = #tpu.pipeline_mode<synchronous>, transform_indices = @transform_2, window_bounds = array<i64: 32, 128>}, {pipeline_mode = #tpu.pipeline_mode<synchronous>, transform_indices = @transform_3, window_bounds = array<i64: 32, 128>}, {pipeline_mode = #tpu.pipeline_mode<synchronous>, transform_indices = @transform_4, window_bounds = array<i64: 128, 128>}, {pipeline_mode = #tpu.pipeline_mode<synchronous>, transform_indices = @transform_5, window_bounds = array<i64: 128, 128>}, {pipeline_mode = #tpu.pipeline_mode<synchronous>, transform_indices = @transform_6, window_bounds = array<i64: 128, 32>}, {pipeline_mode = #tpu.pipeline_mode<synchronous>, transform_indices = @transform_7, window_bounds = array<i64: 128, 128>}, {pipeline_mode = #tpu.pipeline_mode<synchronous>, transform_indices = @transform_8, window_bounds = array<i64: 32, 128>}, {pipeline_mode = #tpu.pipeline_mode<synchronous>, transform_indices = @transform_9, window_bounds = array<i64: 128, 384>}, {pipeline_mode = #tpu.pipeline_mode<synchronous>, transform_indices = @transform_10, window_bounds = array<i64: 1, 384>}, {pipeline_mode = #tpu.pipeline_mode<synchronous>, transform_indices = @transform_11, window_bounds = array<i64: 128, 896>}, {pipeline_mode = #tpu.pipeline_mode<synchronous>, transform_indices = @transform_12, window_bounds = array<i64: 1, 896>}, {pipeline_mode = #tpu.pipeline_mode<synchronous>, transform_indices = @transform_13, window_bounds = array<i64: 1, 128>}, {pipeline_mode = #tpu.pipeline_mode<synchronous>, transform_indices = @transform_14, window_bounds = array<i64: 1, 128>}, {pipeline_mode = #tpu.pipeline_mode<synchronous>, transform_indices = @transform_15, window_bounds = array<i64: 128, 128>}, {pipeline_mode = #tpu.pipeline_mode<synchronous>, transform_indices = @transform_16, window_bounds = array<i64: 512, 128>}, {pipeline_mode = #tpu.pipeline_mode<synchronous>, transform_indices = @transform_17, window_bounds = array<i64: 1, 128>}, {pipeline_mode = #tpu.pipeline_mode<synchronous>, transform_indices = @transform_18, window_bounds = array<i64: 2, 16, 128>}]} {
    %c0 = arith.constant 0 : index
    %c0_0 = arith.constant 0 : index
    %c0_1 = arith.constant 0 : index
    %0 = vector.load %arg1[%c0, %c0_0, %c0_1] : memref<2x16x128xf32, #tpu.memory_space<vmem>>, vector<2x16x128xf32>
    %c0_2 = arith.constant 0 : index
    %c0_3 = arith.constant 0 : index
    %c0_4 = arith.constant 0 : index
    %1 = vector.load %arg2[%c0_2, %c0_3, %c0_4] : memref<2x1x128xf32, #tpu.memory_space<vmem>>, vector<2x1x128xf32>
    %2 = vector.shape_cast %1 : vector<2x1x128xf32> to vector<2x128xf32>
    %3 = arith.negf %2 : vector<2x128xf32>
    %4 = math.exp %3 : vector<2x128xf32>
    %cst = arith.constant 1.000000e+00 : f32
    %5 = vector.broadcast %cst : f32 to vector<2x128xf32>
    %6 = arith.addf %5, %4 : vector<2x128xf32>
    %7 = arith.divf %5, %6 : vector<2x128xf32>
    %8 = arith.mulf %2, %7 : vector<2x128xf32>
    %9 = arith.truncf %8 : vector<2x128xf32> to vector<2x128xbf16>
    %c0_5 = arith.constant 0 : index
    %c0_6 = arith.constant 0 : index
    %10 = vector.load %arg10[%c0_5, %c0_6] : memref<128x384xbf16, #tpu.memory_space<vmem>>, vector<128x384xbf16>
    %cst_7 = arith.constant dense<0.000000e+00> : vector<2x384xf32>
    %11 = tpu.matmul %9, %10, %cst_7 {dimension_numbers = #tpu.dot_dimension_numbers<[1], [0], [0], [1], [0, 0, 1, 1], [], []>} : vector<2x128xbf16>, vector<128x384xbf16>, vector<2x384xf32> -> vector<2x384xf32>
    %c0_8 = arith.constant 0 : index
    %c0_9 = arith.constant 0 : index
    %12 = vector.load %arg11[%c0_8, %c0_9] : memref<1x384xf32, #tpu.memory_space<vmem>>, vector<1x384xf32>
    %13 = vector.broadcast %12 : vector<1x384xf32> to vector<2x384xf32>
    %14 = arith.addf %11, %13 : vector<2x384xf32>
    %15 = vector.extract_strided_slice %14 {offsets = [0, 0], sizes = [2, 128], strides = [1, 1]} : vector<2x384xf32> to vector<2x128xf32>
    %16 = vector.shape_cast %15 : vector<2x128xf32> to vector<2x1x128xf32>
    %17 = vector.extract_strided_slice %14 {offsets = [0, 128], sizes = [2, 128], strides = [1, 1]} : vector<2x384xf32> to vector<2x128xf32>
    %18 = vector.shape_cast %17 : vector<2x128xf32> to vector<2x1x128xf32>
    %19 = vector.extract_strided_slice %14 {offsets = [0, 256], sizes = [2, 128], strides = [1, 1]} : vector<2x384xf32> to vector<2x128xf32>
    %cst_10 = arith.constant dense<0.000000e+00> : vector<2x16xf32>
    %20 = vector.multi_reduction <add>, %0, %cst_10 [2] : vector<2x16x128xf32> to vector<2x16xf32>
    %21 = vector.shape_cast %20 : vector<2x16xf32> to vector<2x16x1xf32>
    %cst_11 = arith.constant 1.280000e+02 : f32
    %22 = vector.broadcast %cst_11 : f32 to vector<2x16x1xf32>
    %23 = arith.divf %21, %22 : vector<2x16x1xf32>
    %24 = vector.broadcast %23 : vector<2x16x1xf32> to vector<2x16x128xf32>
    %25 = arith.subf %0, %24 : vector<2x16x128xf32>
    %26 = arith.mulf %25, %25 : vector<2x16x128xf32>
    %cst_12 = arith.constant dense<0.000000e+00> : vector<2x16xf32>
    %27 = vector.multi_reduction <add>, %26, %cst_12 [2] : vector<2x16x128xf32> to vector<2x16xf32>
    %28 = vector.shape_cast %27 : vector<2x16xf32> to vector<2x16x1xf32>
    %cst_13 = arith.constant 1.280000e+02 : f32
    %29 = vector.broadcast %cst_13 : f32 to vector<2x16x1xf32>
    %30 = arith.divf %28, %29 : vector<2x16x1xf32>
    %31 = vector.broadcast %23 : vector<2x16x1xf32> to vector<2x16x128xf32>
    %32 = arith.subf %0, %31 : vector<2x16x128xf32>
    %cst_14 = arith.constant 9.99999997E-7 : f32
    %33 = vector.broadcast %cst_14 : f32 to vector<2x16x1xf32>
    %34 = arith.addf %30, %33 : vector<2x16x1xf32>
    %35 = math.rsqrt %34 : vector<2x16x1xf32>
    %36 = vector.broadcast %35 : vector<2x16x1xf32> to vector<2x16x128xf32>
    %37 = arith.mulf %32, %36 : vector<2x16x128xf32>
    %cst_15 = arith.constant 1.000000e+00 : f32
    %38 = vector.broadcast %cst_15 : f32 to vector<2x1x128xf32>
    %39 = arith.addf %38, %18 : vector<2x1x128xf32>
    %40 = vector.broadcast %39 : vector<2x1x128xf32> to vector<2x16x128xf32>
    %41 = arith.mulf %40, %37 : vector<2x16x128xf32>
    %42 = vector.broadcast %16 : vector<2x1x128xf32> to vector<2x16x128xf32>
    %43 = arith.addf %41, %42 : vector<2x16x128xf32>
    %44 = vector.shape_cast %43 : vector<2x16x128xf32> to vector<32x128xf32>
    %45 = arith.truncf %44 : vector<32x128xf32> to vector<32x128xbf16>
    %c0_16 = arith.constant 0 : index
    %c0_17 = arith.constant 0 : index
    %46 = vector.load %arg12[%c0_16, %c0_17] : memref<128x896xbf16, #tpu.memory_space<vmem>>, vector<128x896xbf16>
    %cst_18 = arith.constant dense<0.000000e+00> : vector<32x896xf32>
    %47 = tpu.matmul %45, %46, %cst_18 {dimension_numbers = #tpu.dot_dimension_numbers<[1], [0], [0], [1], [0, 0, 1, 1], [], []>} : vector<32x128xbf16>, vector<128x896xbf16>, vector<32x896xf32> -> vector<32x896xf32>
    %c0_19 = arith.constant 0 : index
    %c0_20 = arith.constant 0 : index
    %48 = vector.load %arg13[%c0_19, %c0_20] : memref<1x896xf32, #tpu.memory_space<vmem>>, vector<1x896xf32>
    %49 = vector.broadcast %48 : vector<1x896xf32> to vector<32x896xf32>
    %50 = arith.addf %47, %49 : vector<32x896xf32>
    %51 = vector.extract_strided_slice %50 {offsets = [0, 0], sizes = [32, 128], strides = [1, 1]} : vector<32x896xf32> to vector<32x128xf32>
    %52 = vector.extract_strided_slice %50 {offsets = [0, 128], sizes = [32, 128], strides = [1, 1]} : vector<32x896xf32> to vector<32x128xf32>
    %53 = vector.extract_strided_slice %50 {offsets = [0, 256], sizes = [32, 128], strides = [1, 1]} : vector<32x896xf32> to vector<32x128xf32>
    %54 = vector.extract_strided_slice %50 {offsets = [0, 384], sizes = [32, 512], strides = [1, 1]} : vector<32x896xf32> to vector<32x512xf32>
    %c0_21 = arith.constant 0 : index
    %c0_22 = arith.constant 0 : index
    %55 = vector.load %arg6[%c0_21, %c0_22] : memref<128x128xbf16, #tpu.memory_space<vmem>>, vector<128x128xbf16>
    %c0_23 = arith.constant 0 : index
    %c0_24 = arith.constant 0 : index
    %56 = vector.load %arg5[%c0_23, %c0_24] : memref<128x128xbf16, #tpu.memory_space<vmem>>, vector<128x128xbf16>
    %c0_25 = arith.constant 0 : index
    %c0_26 = arith.constant 0 : index
    %57 = vector.load %arg3[%c0_25, %c0_26] : memref<32x128xf32, #tpu.memory_space<vmem>>, vector<32x128xf32>
    %c0_27 = arith.constant 0 : index
    %c0_28 = arith.constant 0 : index
    %58 = vector.load %arg4[%c0_27, %c0_28] : memref<32x128xf32, #tpu.memory_space<vmem>>, vector<32x128xf32>
    %c0_29 = arith.constant 0 : index
    %c0_30 = arith.constant 0 : index
    %59 = vector.load %arg14[%c0_29, %c0_30] : memref<1x128xf32, #tpu.memory_space<vmem>>, vector<1x128xf32>
    %60 = arith.mulf %51, %51 : vector<32x128xf32>
    %61 = arith.truncf %60 : vector<32x128xf32> to vector<32x128xbf16>
    %cst_31 = arith.constant dense<0.000000e+00> : vector<32x128xf32>
    %62 = tpu.matmul %61, %55, %cst_31 {dimension_numbers = #tpu.dot_dimension_numbers<[1], [0], [0], [1], [0, 0, 1, 1], [], []>} : vector<32x128xbf16>, vector<128x128xbf16>, vector<32x128xf32> -> vector<32x128xf32>
    %cst_32 = arith.constant 9.99999997E-7 : f32
    %63 = vector.broadcast %cst_32 : f32 to vector<32x128xf32>
    %64 = arith.addf %62, %63 : vector<32x128xf32>
    %65 = math.rsqrt %64 : vector<32x128xf32>
    %66 = arith.mulf %51, %65 : vector<32x128xf32>
    %67 = vector.broadcast %59 : vector<1x128xf32> to vector<32x128xf32>
    %68 = arith.mulf %66, %67 : vector<32x128xf32>
    %69 = arith.truncf %68 : vector<32x128xf32> to vector<32x128xbf16>
    %cst_33 = arith.constant dense<0.000000e+00> : vector<32x128xf32>
    %70 = tpu.matmul %69, %56, %cst_33 {dimension_numbers = #tpu.dot_dimension_numbers<[1], [0], [0], [1], [0, 0, 1, 1], [], []>} : vector<32x128xbf16>, vector<128x128xbf16>, vector<32x128xf32> -> vector<32x128xf32>
    %71 = arith.mulf %68, %57 : vector<32x128xf32>
    %72 = arith.mulf %70, %58 : vector<32x128xf32>
    %73 = arith.addf %71, %72 : vector<32x128xf32>
    %74 = arith.truncf %73 : vector<32x128xf32> to vector<32x128xbf16>
    %c0_34 = arith.constant 0 : index
    %c0_35 = arith.constant 0 : index
    %75 = vector.load %arg15[%c0_34, %c0_35] : memref<1x128xf32, #tpu.memory_space<vmem>>, vector<1x128xf32>
    %76 = arith.mulf %52, %52 : vector<32x128xf32>
    %77 = arith.truncf %76 : vector<32x128xf32> to vector<32x128xbf16>
    %cst_36 = arith.constant dense<0.000000e+00> : vector<32x128xf32>
    %78 = tpu.matmul %77, %55, %cst_36 {dimension_numbers = #tpu.dot_dimension_numbers<[1], [0], [0], [1], [0, 0, 1, 1], [], []>} : vector<32x128xbf16>, vector<128x128xbf16>, vector<32x128xf32> -> vector<32x128xf32>
    %cst_37 = arith.constant 9.99999997E-7 : f32
    %79 = vector.broadcast %cst_37 : f32 to vector<32x128xf32>
    %80 = arith.addf %78, %79 : vector<32x128xf32>
    %81 = math.rsqrt %80 : vector<32x128xf32>
    %82 = arith.mulf %52, %81 : vector<32x128xf32>
    %83 = vector.broadcast %75 : vector<1x128xf32> to vector<32x128xf32>
    %84 = arith.mulf %82, %83 : vector<32x128xf32>
    %85 = arith.truncf %84 : vector<32x128xf32> to vector<32x128xbf16>
    %cst_38 = arith.constant dense<0.000000e+00> : vector<32x128xf32>
    %86 = tpu.matmul %85, %56, %cst_38 {dimension_numbers = #tpu.dot_dimension_numbers<[1], [0], [0], [1], [0, 0, 1, 1], [], []>} : vector<32x128xbf16>, vector<128x128xbf16>, vector<32x128xf32> -> vector<32x128xf32>
    %87 = arith.mulf %84, %57 : vector<32x128xf32>
    %88 = arith.mulf %86, %58 : vector<32x128xf32>
    %89 = arith.addf %87, %88 : vector<32x128xf32>
    %90 = arith.truncf %89 : vector<32x128xf32> to vector<32x128xbf16>
    %91 = arith.truncf %53 : vector<32x128xf32> to vector<32x128xbf16>
    %c0_39 = arith.constant 0 : index
    %c0_40 = arith.constant 0 : index
    %92 = vector.load %arg7[%c0_39, %c0_40] : memref<128x32xbf16, #tpu.memory_space<vmem>>, vector<128x32xbf16>
    %c0_41 = arith.constant 0 : index
    %c0_42 = arith.constant 0 : index
    %93 = vector.load %arg8[%c0_41, %c0_42] : memref<128x128xf32, #tpu.memory_space<vmem>>, vector<128x128xf32>
    %cst_43 = arith.constant dense<0.000000e+00> : vector<128x128xf32>
    %94 = tpu.matmul %92, %90, %cst_43 {dimension_numbers = #tpu.dot_dimension_numbers<[1], [0], [0], [1], [0, 0, 1, 1], [], []>} : vector<128x32xbf16>, vector<32x128xbf16>, vector<128x128xf32> -> vector<128x128xf32>
    %95 = arith.mulf %94, %93 : vector<128x128xf32>
    %96 = arith.truncf %95 : vector<128x128xf32> to vector<128x128xbf16>
    %cst_44 = arith.constant dense<0.000000e+00> : vector<128x128xf32>
    %97 = tpu.matmul %92, %91, %cst_44 {dimension_numbers = #tpu.dot_dimension_numbers<[1], [0], [0], [1], [0, 0, 1, 1], [], []>} : vector<128x32xbf16>, vector<32x128xbf16>, vector<128x128xf32> -> vector<128x128xf32>
    %98 = arith.mulf %97, %93 : vector<128x128xf32>
    %99 = arith.truncf %98 : vector<128x128xf32> to vector<128x128xbf16>
    %cst_45 = arith.constant dense<0.000000e+00> : vector<32x128xf32>
    %100 = tpu.matmul %74, %96, %cst_45 {dimension_numbers = #tpu.dot_dimension_numbers<[1], [1], [0], [0], [0, 0, 1, 0], [], []>} : vector<32x128xbf16>, vector<128x128xbf16>, vector<32x128xf32> -> vector<32x128xf32>
    %c0_46 = arith.constant 0 : index
    %c0_47 = arith.constant 0 : index
    %101 = vector.load %arg9[%c0_46, %c0_47] : memref<32x128xf32, #tpu.memory_space<vmem>>, vector<32x128xf32>
    %102 = arith.addf %100, %101 : vector<32x128xf32>
    %cst_48 = arith.constant dense<0xFF800000> : vector<32xf32>
    %103 = vector.multi_reduction <maximumf>, %102, %cst_48 [1] : vector<32x128xf32> to vector<32xf32>
    %104 = vector.shape_cast %103 : vector<32xf32> to vector<32x1xf32>
    %105 = vector.broadcast %104 : vector<32x1xf32> to vector<32x128xf32>
    %106 = arith.subf %102, %105 : vector<32x128xf32>
    %107 = math.exp %106 : vector<32x128xf32>
    %108 = arith.truncf %107 : vector<32x128xf32> to vector<32x128xbf16>
    %cst_49 = arith.constant dense<0.000000e+00> : vector<32x128xf32>
    %109 = tpu.matmul %108, %99, %cst_49 {dimension_numbers = #tpu.dot_dimension_numbers<[1], [0], [0], [1], [0, 0, 1, 1], [], []>} : vector<32x128xbf16>, vector<128x128xbf16>, vector<32x128xf32> -> vector<32x128xf32>
    %110 = arith.truncf %93 : vector<128x128xf32> to vector<128x128xbf16>
    %cst_50 = arith.constant dense<0.000000e+00> : vector<32x128xf32>
    %111 = tpu.matmul %108, %110, %cst_50 {dimension_numbers = #tpu.dot_dimension_numbers<[1], [0], [0], [1], [0, 0, 1, 1], [], []>} : vector<32x128xbf16>, vector<128x128xbf16>, vector<32x128xf32> -> vector<32x128xf32>
    %112 = tpu.reciprocal %111 {approx = true} : vector<32x128xf32> -> vector<32x128xf32>
    %113 = arith.mulf %109, %112 : vector<32x128xf32>
    %114 = arith.truncf %113 : vector<32x128xf32> to vector<32x128xbf16>
    %c0_51 = arith.constant 0 : index
    %c0_52 = arith.constant 0 : index
    %115 = vector.load %arg16[%c0_51, %c0_52] : memref<128x128xbf16, #tpu.memory_space<vmem>>, vector<128x128xbf16>
    %cst_53 = arith.constant dense<0.000000e+00> : vector<32x128xf32>
    %116 = tpu.matmul %114, %115, %cst_53 {dimension_numbers = #tpu.dot_dimension_numbers<[1], [0], [0], [1], [0, 0, 1, 1], [], []>} : vector<32x128xbf16>, vector<128x128xbf16>, vector<32x128xf32> -> vector<32x128xf32>
    %117 = arith.mulf %54, %54 : vector<32x512xf32>
    %118 = arith.mulf %54, %117 : vector<32x512xf32>
    %cst_54 = arith.constant 4.471500e-02 : f32
    %119 = vector.broadcast %cst_54 : f32 to vector<32x512xf32>
    %120 = arith.mulf %119, %118 : vector<32x512xf32>
    %121 = arith.addf %54, %120 : vector<32x512xf32>
    %cst_55 = arith.constant 0.797884583 : f32
    %122 = vector.broadcast %cst_55 : f32 to vector<32x512xf32>
    %123 = arith.mulf %122, %121 : vector<32x512xf32>
    %124 = math.tanh %123 : vector<32x512xf32>
    %cst_56 = arith.constant 1.000000e+00 : f32
    %125 = vector.broadcast %cst_56 : f32 to vector<32x512xf32>
    %126 = arith.addf %125, %124 : vector<32x512xf32>
    %cst_57 = arith.constant 5.000000e-01 : f32
    %127 = vector.broadcast %cst_57 : f32 to vector<32x512xf32>
    %128 = arith.mulf %127, %126 : vector<32x512xf32>
    %129 = arith.mulf %54, %128 : vector<32x512xf32>
    %130 = arith.truncf %129 : vector<32x512xf32> to vector<32x512xbf16>
    %c0_58 = arith.constant 0 : index
    %c0_59 = arith.constant 0 : index
    %131 = vector.load %arg17[%c0_58, %c0_59] : memref<512x128xbf16, #tpu.memory_space<vmem>>, vector<512x128xbf16>
    %cst_60 = arith.constant dense<0.000000e+00> : vector<32x128xf32>
    %132 = tpu.matmul %130, %131, %cst_60 {dimension_numbers = #tpu.dot_dimension_numbers<[1], [0], [0], [1], [0, 0, 1, 1], [], []>} : vector<32x512xbf16>, vector<512x128xbf16>, vector<32x128xf32> -> vector<32x128xf32>
    %133 = arith.addf %116, %132 : vector<32x128xf32>
    %c0_61 = arith.constant 0 : index
    %c0_62 = arith.constant 0 : index
    %134 = vector.load %arg18[%c0_61, %c0_62] : memref<1x128xf32, #tpu.memory_space<vmem>>, vector<1x128xf32>
    %135 = vector.broadcast %134 : vector<1x128xf32> to vector<32x128xf32>
    %136 = arith.addf %133, %135 : vector<32x128xf32>
    %137 = vector.extract_strided_slice %0 {offsets = [0, 0, 0], sizes = [1, 16, 128], strides = [1, 1, 1]} : vector<2x16x128xf32> to vector<1x16x128xf32>
    %138 = vector.shape_cast %137 : vector<1x16x128xf32> to vector<16x128xf32>
    %139 = vector.extract_strided_slice %19 {offsets = [0, 0], sizes = [1, 128], strides = [1, 1]} : vector<2x128xf32> to vector<1x128xf32>
    %140 = vector.extract_strided_slice %136 {offsets = [0, 0], sizes = [16, 128], strides = [1, 1]} : vector<32x128xf32> to vector<16x128xf32>
    %141 = vector.broadcast %139 : vector<1x128xf32> to vector<16x128xf32>
    %142 = arith.mulf %141, %140 : vector<16x128xf32>
    %143 = arith.addf %138, %142 : vector<16x128xf32>
    %c0_63 = arith.constant 0 : index
    %c0_64 = arith.constant 0 : index
    %c0_65 = arith.constant 0 : index
    %144 = vector.load %arg19[%c0_63, %c0_64, %c0_65] : memref<2x16x128xf32, #tpu.memory_space<vmem>>, vector<1x16x128xf32>
    %145 = vector.shape_cast %144 : vector<1x16x128xf32> to vector<16x128xf32>
    %146 = vector.shape_cast %143 : vector<16x128xf32> to vector<1x16x128xf32>
    tpu.vector_store %arg19[%c0_63, %c0_64, %c0_65], %146 {strides = array<i32>} : memref<2x16x128xf32, #tpu.memory_space<vmem>>, vector<1x16x128xf32>,
    %147 = vector.extract_strided_slice %0 {offsets = [1, 0, 0], sizes = [1, 16, 128], strides = [1, 1, 1]} : vector<2x16x128xf32> to vector<1x16x128xf32>
    %148 = vector.shape_cast %147 : vector<1x16x128xf32> to vector<16x128xf32>
    %149 = vector.extract_strided_slice %19 {offsets = [1, 0], sizes = [1, 128], strides = [1, 1]} : vector<2x128xf32> to vector<1x128xf32>
    %150 = vector.extract_strided_slice %136 {offsets = [16, 0], sizes = [16, 128], strides = [1, 1]} : vector<32x128xf32> to vector<16x128xf32>
    %151 = vector.broadcast %149 : vector<1x128xf32> to vector<16x128xf32>
    %152 = arith.mulf %151, %150 : vector<16x128xf32>
    %153 = arith.addf %148, %152 : vector<16x128xf32>
    %c1 = arith.constant 1 : index
    %c0_66 = arith.constant 0 : index
    %c0_67 = arith.constant 0 : index
    %154 = vector.load %arg19[%c1, %c0_66, %c0_67] : memref<2x16x128xf32, #tpu.memory_space<vmem>>, vector<1x16x128xf32>
    %155 = vector.shape_cast %154 : vector<1x16x128xf32> to vector<16x128xf32>
    %156 = vector.shape_cast %153 : vector<16x128xf32> to vector<1x16x128xf32>
    tpu.vector_store %arg19[%c1, %c0_66, %c0_67], %156 {strides = array<i32>} : memref<2x16x128xf32, #tpu.memory_space<vmem>>, vector<1x16x128xf32>,
    return
  }
  func.func @transform_0(%arg0: i32) -> (i32, i32, i32) {
    %c0_i32 = arith.constant 0 : i32
    %c0_i32_0 = arith.constant 0 : i32
    %c0_i32_1 = arith.constant 0 : i32
    %c0_i32_2 = arith.constant 0 : i32
    return %c0_i32, %c0_i32_0, %c0_i32_1 : i32, i32, i32
  }
  func.func @transform_1(%arg0: i32) -> (i32, i32, i32) {
    %c0_i32 = arith.constant 0 : i32
    %c0_i32_0 = arith.constant 0 : i32
    %c0_i32_1 = arith.constant 0 : i32
    %c0_i32_2 = arith.constant 0 : i32
    return %c0_i32, %c0_i32_0, %c0_i32_1 : i32, i32, i32
  }
  func.func @transform_2(%arg0: i32) -> (i32, i32) {
    %c0_i32 = arith.constant 0 : i32
    %c0_i32_0 = arith.constant 0 : i32
    %c0_i32_1 = arith.constant 0 : i32
    return %c0_i32, %c0_i32_0 : i32, i32
  }
  func.func @transform_3(%arg0: i32) -> (i32, i32) {
    %c0_i32 = arith.constant 0 : i32
    %c0_i32_0 = arith.constant 0 : i32
    %c0_i32_1 = arith.constant 0 : i32
    return %c0_i32, %c0_i32_0 : i32, i32
  }
  func.func @transform_4(%arg0: i32) -> (i32, i32) {
    %c0_i32 = arith.constant 0 : i32
    %c0_i32_0 = arith.constant 0 : i32
    %c0_i32_1 = arith.constant 0 : i32
    return %c0_i32, %c0_i32_0 : i32, i32
  }
  func.func @transform_5(%arg0: i32) -> (i32, i32) {
    %c0_i32 = arith.constant 0 : i32
    %c0_i32_0 = arith.constant 0 : i32
    %c0_i32_1 = arith.constant 0 : i32
    return %c0_i32, %c0_i32_0 : i32, i32
  }
  func.func @transform_6(%arg0: i32) -> (i32, i32) {
    %c0_i32 = arith.constant 0 : i32
    %c0_i32_0 = arith.constant 0 : i32
    %c0_i32_1 = arith.constant 0 : i32
    return %c0_i32, %c0_i32_0 : i32, i32
  }
  func.func @transform_7(%arg0: i32) -> (i32, i32) {
    %c0_i32 = arith.constant 0 : i32
    %c0_i32_0 = arith.constant 0 : i32
    %c0_i32_1 = arith.constant 0 : i32
    return %c0_i32, %c0_i32_0 : i32, i32
  }
  func.func @transform_8(%arg0: i32) -> (i32, i32) {
    %c0_i32 = arith.constant 0 : i32
    %c0_i32_0 = arith.constant 0 : i32
    %c0_i32_1 = arith.constant 0 : i32
    return %c0_i32, %c0_i32_0 : i32, i32
  }
  func.func @transform_9(%arg0: i32) -> (i32, i32) {
    %c0_i32 = arith.constant 0 : i32
    %c0_i32_0 = arith.constant 0 : i32
    %c0_i32_1 = arith.constant 0 : i32
    return %c0_i32, %c0_i32_0 : i32, i32
  }
  func.func @transform_10(%arg0: i32) -> (i32, i32) {
    %c0_i32 = arith.constant 0 : i32
    %c0_i32_0 = arith.constant 0 : i32
    %c0_i32_1 = arith.constant 0 : i32
    return %c0_i32, %c0_i32_0 : i32, i32
  }
  func.func @transform_11(%arg0: i32) -> (i32, i32) {
    %c0_i32 = arith.constant 0 : i32
    %c0_i32_0 = arith.constant 0 : i32
    %c0_i32_1 = arith.constant 0 : i32
    return %c0_i32, %c0_i32_0 : i32, i32
  }
  func.func @transform_12(%arg0: i32) -> (i32, i32) {
    %c0_i32 = arith.constant 0 : i32
    %c0_i32_0 = arith.constant 0 : i32
    %c0_i32_1 = arith.constant 0 : i32
    return %c0_i32, %c0_i32_0 : i32, i32
  }
  func.func @transform_13(%arg0: i32) -> (i32, i32) {
    %c0_i32 = arith.constant 0 : i32
    %c0_i32_0 = arith.constant 0 : i32
    %c0_i32_1 = arith.constant 0 : i32
    return %c0_i32, %c0_i32_0 : i32, i32
  }
  func.func @transform_14(%arg0: i32) -> (i32, i32) {
    %c0_i32 = arith.constant 0 : i32
    %c0_i32_0 = arith.constant 0 : i32
    %c0_i32_1 = arith.constant 0 : i32
    return %c0_i32, %c0_i32_0 : i32, i32
  }
  func.func @transform_15(%arg0: i32) -> (i32, i32) {
    %c0_i32 = arith.constant 0 : i32
    %c0_i32_0 = arith.constant 0 : i32
    %c0_i32_1 = arith.constant 0 : i32
    return %c0_i32, %c0_i32_0 : i32, i32
  }
  func.func @transform_16(%arg0: i32) -> (i32, i32) {
    %c0_i32 = arith.constant 0 : i32
    %c0_i32_0 = arith.constant 0 : i32
    %c0_i32_1 = arith.constant 0 : i32
    return %c0_i32, %c0_i32_0 : i32, i32
  }
  func.func @transform_17(%arg0: i32) -> (i32, i32) {
    %c0_i32 = arith.constant 0 : i32
    %c0_i32_0 = arith.constant 0 : i32
    %c0_i32_1 = arith.constant 0 : i32
    return %c0_i32, %c0_i32_0 : i32, i32
  }
  func.func @transform_18(%arg0: i32) -> (i32, i32, i32) {
    %c0_i32 = arith.constant 0 : i32
    %c0_i32_0 = arith.constant 0 : i32
    %c0_i32_1 = arith.constant 0 : i32
    %c0_i32_2 = arith.constant 0 : i32
    return %c0_i32, %c0_i32_0, %c0_i32_1 : i32, i32, i32
  }
}

</mosaic_0001>

<llo_original>
// kernel: tpu_custom_call.1
$region0: #{tpu_custom_call.1}
  #allocation0 [shape = 'u32[]', space=smem, size = 0x4, offset = 0x4, fixed_abs, tag = 'smem constant byte address 0x4 - core index']
  #allocation1 [shape = 'u32[72,128]{1,0:T(1,128)}', space=vmem, size = 0x9000, scoped, tag = 'internal scratch']
  %s0 = inlined_call_operand.hbm [shape: f32[2,16,128], index: 0, kind: input, shape index: {}]
  %s1 = inlined_call_operand.vmem [shape: f32[2,1,128], index: 1, kind: input, shape index: {}]
  %s2 = inlined_call_operand.hbm [shape: f32[32,128], index: 2, kind: input, shape index: {}]
  %s3 = inlined_call_operand.hbm [shape: f32[32,128], index: 3, kind: input, shape index: {}]
  %s4 = inlined_call_operand.vmem [shape: bf16[128,128], index: 4, kind: input, shape index: {}]
  %s5 = inlined_call_operand.hbm [shape: bf16[128,128], index: 5, kind: input, shape index: {}]
  %s6 = inlined_call_operand.vmem [shape: bf16[128,32], index: 6, kind: input, shape index: {}]
  %s7 = inlined_call_operand.hbm [shape: f32[128,128], index: 7, kind: input, shape index: {}]
  %s8 = inlined_call_operand.hbm [shape: f32[32,128], index: 8, kind: input, shape index: {}]
  %s9 = inlined_call_operand.hbm [shape: bf16[128,384], index: 9, kind: input, shape index: {}]
  %s10 = inlined_call_operand.vmem [shape: f32[1,384], index: 10, kind: input, shape index: {}]
  %s11 = inlined_call_operand.hbm [shape: bf16[128,896], index: 11, kind: input, shape index: {}]
  %s12 = inlined_call_operand.vmem [shape: f32[1,896], index: 12, kind: input, shape index: {}]
  %s13 = inlined_call_operand.vmem [shape: f32[1,128], index: 13, kind: input, shape index: {}]
  %s14 = inlined_call_operand.vmem [shape: f32[1,128], index: 14, kind: input, shape index: {}]
  %s15 = inlined_call_operand.hbm [shape: bf16[128,128], index: 15, kind: input, shape index: {}]
  %s16 = inlined_call_operand.hbm [shape: bf16[512,128], index: 16, kind: input, shape index: {}]
  %s17 = inlined_call_operand.vmem [shape: f32[1,128], index: 17, kind: input, shape index: {}]
  %s18 = inlined_call_operand.hbm [shape: f32[2,16,128], index: 18, kind: output, shape index: {}]
  %s19 = sld [smem:[#allocation0]]
  $region122: #{tpu_custom_call.1} parent=0
    _
  %s21 = ssub.s32 1, %s19
  %s22 = scalar_select 0, %s21, %s19
  $region1: #{tpu_custom_call.1} parent=0
    #allocation2 [shape = 'u8[16384]{0}', space=vmem, size = 0x4000, scoped, tag = 'input window, operand 0, single buffered']
    #allocation3 [shape = 's32[1]{0}', space=sflag, size = 0x4, scoped, tag = 'scoped memory for tpu_custom_call.1']
    #allocation4 [shape = 's32[1]{0}', space=sflag, size = 0x4, scoped, tag = 'scoped memory for tpu_custom_call.1']
    #allocation5 [shape = 'u8[16384]{0}', space=vmem, size = 0x4000, scoped, tag = 'input window, operand 2, single buffered']
    #allocation6 [shape = 's32[1]{0}', space=sflag, size = 0x4, scoped, tag = 'scoped memory for tpu_custom_call.1']
    #allocation7 [shape = 'u8[16384]{0}', space=vmem, size = 0x4000, scoped, tag = 'input window, operand 3, single buffered']
    #allocation8 [shape = 'u8[32768]{0}', space=vmem, size = 0x8000, scoped, tag = 'input window, operand 5, single buffered']
    #allocation9 [shape = 's32[1]{0}', space=sflag, size = 0x4, scoped, tag = 'scoped memory for tpu_custom_call.1']
    #allocation10 [shape = 'u8[65536]{0}', space=vmem, size = 0x10000, scoped, tag = 'input window, operand 7, single buffered']
    #allocation11 [shape = 'u8[16384]{0}', space=vmem, size = 0x4000, scoped, tag = 'input window, operand 8, single buffered']
    #allocation12 [shape = 's32[1]{0}', space=sflag, size = 0x4, scoped, tag = 'scoped memory for tpu_custom_call.1']
    #allocation13 [shape = 'u8[98304]{0}', space=vmem, size = 0x18000, scoped, tag = 'input window, operand 9, single buffered']
    #allocation14 [shape = 'u8[229376]{0}', space=vmem, size = 0x38000, scoped, tag = 'input window, operand 11, single buffered']
    #allocation15 [shape = 's32[1]{0}', space=sflag, size = 0x4, scoped, tag = 'scoped memory for tpu_custom_call.1']
    #allocation16 [shape = 'u8[32768]{0}', space=vmem, size = 0x8000, scoped, tag = 'input window, operand 15, single buffered']
    #allocation17 [shape = 'u8[131072]{0}', space=vmem, size = 0x20000, scoped, tag = 'input window, operand 16, single buffered']
    #allocation18 [shape = 's32[1]{0}', space=sflag, size = 0x4, scoped, tag = 'scoped memory for tpu_custom_call.1']
    #allocation19 [shape = 'u8[16384]{0}', space=vmem, size = 0x4000, scoped, tag = 'output window, operand 0, single buffered']
    %23 = vsyncpa [#allocation3], 0
    %24 = vsyncpa [#allocation6], 0
    %25 = vsyncpa [#allocation9], 0
    %26 = vsyncpa [#allocation12], 0
    %27 = vsyncpa [#allocation15], 0
    %28 = vsyncpa [#allocation18], 0
    %29 = vsyncpa [#allocation4], 0
    // Predicated region
    $region2: #{tpu_custom_call.1} parent=1 // pred_check
      _
    $region3: #{tpu_custom_call.1} parent=1 // pred_check_branch
      %31 = sbr.rel (0) target = $region5
    $region4: #{tpu_custom_call.1} parent=1 // pred_region
      %33 = vsyncadd [#allocation3], 0
      %s34 = sshll.u32 %s0, 4
      %s35 = int_to_ptr.hbm [resolvable:$true] %s34
      %s36 = sshll.u32 [#allocation2], 4
      %s37 = int_to_ptr.vmem [resolvable:$true] %s36
      %42 = dma.hbm_to_vmem [thread:$0]  %s35, 512, %s37, [#allocation3], 128, 128, 8
    $region5: #{tpu_custom_call.1} parent=1 // pred_fallthru
      _
    // Predicated region
    $region6: #{tpu_custom_call.1} parent=1 // pred_check
      _
    $region7: #{tpu_custom_call.1} parent=1 // pred_check_branch
      %44 = sbr.rel (0) target = $region9
    $region8: #{tpu_custom_call.1} parent=1 // pred_region
      _
    $region9: #{tpu_custom_call.1} parent=1 // pred_fallthru
      _
    // Predicated region
    $region10: #{tpu_custom_call.1} parent=1 // pred_check
      _
    $region11: #{tpu_custom_call.1} parent=1 // pred_check_branch
      %46 = sbr.rel (0) target = $region13
    $region12: #{tpu_custom_call.1} parent=1 // pred_region
      %48 = vsyncadd [#allocation6], 0
      %s49 = sshll.u32 %s2, 4
      %s50 = int_to_ptr.hbm [resolvable:$true] %s49
      %s51 = sshll.u32 [#allocation5], 4
      %s52 = int_to_ptr.vmem [resolvable:$true] %s51
      %57 = dma.hbm_to_vmem [thread:$0]  %s50, 512, %s52, [#allocation6], 128, 128, 8
    $region13: #{tpu_custom_call.1} parent=1 // pred_fallthru
      _
    // Predicated region
    $region14: #{tpu_custom_call.1} parent=1 // pred_check
      _
    $region15: #{tpu_custom_call.1} parent=1 // pred_check_branch
      %59 = sbr.rel (0) target = $region17
    $region16: #{tpu_custom_call.1} parent=1 // pred_region
      %61 = vsyncadd [#allocation6], 0
      %s62 = sshll.u32 %s3, 4
      %s63 = int_to_ptr.hbm [resolvable:$true] %s62
      %s64 = sshll.u32 [#allocation7], 4
      %s65 = int_to_ptr.vmem [resolvable:$true] %s64
      %70 = dma.hbm_to_vmem [thread:$0]  %s63, 512, %s65, [#allocation6], 128, 128, 8
    $region17: #{tpu_custom_call.1} parent=1 // pred_fallthru
      _
    // Predicated region
    $region18: #{tpu_custom_call.1} parent=1 // pred_check
      _
    $region19: #{tpu_custom_call.1} parent=1 // pred_check_branch
      %72 = sbr.rel (0) target = $region21
    $region20: #{tpu_custom_call.1} parent=1 // pred_region
      _
    $region21: #{tpu_custom_call.1} parent=1 // pred_fallthru
      _
    // Predicated region
    $region22: #{tpu_custom_call.1} parent=1 // pred_check
      _
    $region23: #{tpu_custom_call.1} parent=1 // pred_check_branch
      %74 = sbr.rel (0) target = $region25
    $region24: #{tpu_custom_call.1} parent=1 // pred_region
      %76 = vsyncadd [#allocation9], 0
      %s77 = sshll.u32 %s5, 4
      %s78 = int_to_ptr.hbm [resolvable:$true] %s77
      %s79 = sshll.u32 [#allocation8], 4
      %s80 = int_to_ptr.vmem [resolvable:$true] %s79
      %85 = dma.hbm_to_vmem [thread:$0]  %s78, 1024, %s80, [#allocation9], 64, 64, 4
    $region25: #{tpu_custom_call.1} parent=1 // pred_fallthru
      _
    // Predicated region
    $region26: #{tpu_custom_call.1} parent=1 // pred_check
      _
    $region27: #{tpu_custom_call.1} parent=1 // pred_check_branch
      %87 = sbr.rel (0) target = $region29
    $region28: #{tpu_custom_call.1} parent=1 // pred_region
      _
    $region29: #{tpu_custom_call.1} parent=1 // pred_fallthru
      _
    // Predicated region
    $region30: #{tpu_custom_call.1} parent=1 // pred_check
      _
    $region31: #{tpu_custom_call.1} parent=1 // pred_check_branch
      %89 = sbr.rel (0) target = $region33
    $region32: #{tpu_custom_call.1} parent=1 // pred_region
      %91 = vsyncadd [#allocation9], 0
      %s92 = sshll.u32 %s7, 4
      %s93 = int_to_ptr.hbm [resolvable:$true] %s92
      %s94 = sshll.u32 [#allocation10], 4
      %s95 = int_to_ptr.vmem [resolvable:$true] %s94
      %100 = dma.hbm_to_vmem [thread:$0]  %s93, 2048, %s95, [#allocation9], 128, 128, 8
    $region33: #{tpu_custom_call.1} parent=1 // pred_fallthru
      _
    // Predicated region
    $region34: #{tpu_custom_call.1} parent=1 // pred_check
      _
    $region35: #{tpu_custom_call.1} parent=1 // pred_check_branch
      %102 = sbr.rel (0) target = $region37
    $region36: #{tpu_custom_call.1} parent=1 // pred_region
      %104 = vsyncadd [#allocation12], 0
      %s105 = sshll.u32 %s8, 4
      %s106 = int_to_ptr.hbm [resolvable:$true] %s105
      %s107 = sshll.u32 [#allocation11], 4
      %s108 = int_to_ptr.vmem [resolvable:$true] %s107
      %113 = dma.hbm_to_vmem [thread:$0]  %s106, 512, %s108, [#allocation12], 128, 128, 8
    $region37: #{tpu_custom_call.1} parent=1 // pred_fallthru
      _
    // Predicated region
    $region38: #{tpu_custom_call.1} parent=1 // pred_check
      _
    $region39: #{tpu_custom_call.1} parent=1 // pred_check_branch
      %115 = sbr.rel (0) target = $region41
    $region40: #{tpu_custom_call.1} parent=1 // pred_region
      %117 = vsyncadd [#allocation12], 0
      %s118 = sshll.u32 %s9, 4
      %s119 = int_to_ptr.hbm [resolvable:$true] %s118
      %s120 = sshll.u32 [#allocation13], 4
      %s121 = int_to_ptr.vmem [resolvable:$true] %s120
      %126 = dma.hbm_to_vmem [thread:$0]  %s119, 3072, %s121, [#allocation12], 192, 192, 12
    $region41: #{tpu_custom_call.1} parent=1 // pred_fallthru
      _
    // Predicated region
    $region42: #{tpu_custom_call.1} parent=1 // pred_check
      _
    $region43: #{tpu_custom_call.1} parent=1 // pred_check_branch
      %128 = sbr.rel (0) target = $region45
    $region44: #{tpu_custom_call.1} parent=1 // pred_region
      _
    $region45: #{tpu_custom_call.1} parent=1 // pred_fallthru
      _
    // Predicated region
    $region46: #{tpu_custom_call.1} parent=1 // pred_check
      _
    $region47: #{tpu_custom_call.1} parent=1 // pred_check_branch
      %130 = sbr.rel (0) target = $region49
    $region48: #{tpu_custom_call.1} parent=1 // pred_region
      %132 = vsyncadd [#allocation15], 0
      %s133 = sshll.u32 %s11, 4
      %s134 = int_to_ptr.hbm [resolvable:$true] %s133
      %s135 = sshll.u32 [#allocation14], 4
      %s136 = int_to_ptr.vmem [resolvable:$true] %s135
      %141 = dma.hbm_to_vmem [thread:$0]  %s134, 7168, %s136, [#allocation15], 448, 448, 28
    $region49: #{tpu_custom_call.1} parent=1 // pred_fallthru
      _
    // Predicated region
    $region50: #{tpu_custom_call.1} parent=1 // pred_check
      _
    $region51: #{tpu_custom_call.1} parent=1 // pred_check_branch
      %143 = sbr.rel (0) target = $region53
    $region52: #{tpu_custom_call.1} parent=1 // pred_region
      _
    $region53: #{tpu_custom_call.1} parent=1 // pred_fallthru
      _
    // Predicated region
    $region54: #{tpu_custom_call.1} parent=1 // pred_check
      _
    $region55: #{tpu_custom_call.1} parent=1 // pred_check_branch
      %145 = sbr.rel (0) target = $region57
    $region56: #{tpu_custom_call.1} parent=1 // pred_region
      _
    $region57: #{tpu_custom_call.1} parent=1 // pred_fallthru
      _
    // Predicated region
    $region58: #{tpu_custom_call.1} parent=1 // pred_check
      _
    $region59: #{tpu_custom_call.1} parent=1 // pred_check_branch
      %147 = sbr.rel (0) target = $region61
    $region60: #{tpu_custom_call.1} parent=1 // pred_region
      _
    $region61: #{tpu_custom_call.1} parent=1 // pred_fallthru
      _
    // Predicated region
    $region62: #{tpu_custom_call.1} parent=1 // pred_check
      _
    $region63: #{tpu_custom_call.1} parent=1 // pred_check_branch
      %149 = sbr.rel (0) target = $region65
    $region64: #{tpu_custom_call.1} parent=1 // pred_region
      %151 = vsyncadd [#allocation15], 0
      %s152 = sshll.u32 %s15, 4
      %s153 = int_to_ptr.hbm [resolvable:$true] %s152
      %s154 = sshll.u32 [#allocation16], 4
      %s155 = int_to_ptr.vmem [resolvable:$true] %s154
      %160 = dma.hbm_to_vmem [thread:$0]  %s153, 1024, %s155, [#allocation15], 64, 64, 4
    $region65: #{tpu_custom_call.1} parent=1 // pred_fallthru
      _
    // Predicated region
    $region66: #{tpu_custom_call.1} parent=1 // pred_check
      _
    $region67: #{tpu_custom_call.1} parent=1 // pred_check_branch
      %162 = sbr.rel (0) target = $region69
    $region68: #{tpu_custom_call.1} parent=1 // pred_region
      %164 = vsyncadd [#allocation18], 0
      %s165 = sshll.u32 %s16, 4
      %s166 = int_to_ptr.hbm [resolvable:$true] %s165
      %s167 = sshll.u32 [#allocation17], 4
      %s168 = int_to_ptr.vmem [resolvable:$true] %s167
      %173 = dma.hbm_to_vmem [thread:$0]  %s166, 4096, %s168, [#allocation18], 64, 64, 4
    $region69: #{tpu_custom_call.1} parent=1 // pred_fallthru
      _
    // Predicated region
    $region70: #{tpu_custom_call.1} parent=1 // pred_check
      _
    $region71: #{tpu_custom_call.1} parent=1 // pred_check_branch
      %175 = sbr.rel (0) target = $region73
    $region72: #{tpu_custom_call.1} parent=1 // pred_region
      _
    $region73: #{tpu_custom_call.1} parent=1 // pred_fallthru
      _
    // Predicated region
    $region74: #{tpu_custom_call.1} parent=1 // pred_check
      _
    $region75: #{tpu_custom_call.1} parent=1 // pred_check_branch
      %177 = sbr.rel (0) target = $region77
    $region76: #{tpu_custom_call.1} parent=1 // pred_region
      %179 = dma.done [#allocation3], 512
    $region77: #{tpu_custom_call.1} parent=1 // pred_fallthru
      _
    // Predicated region
    $region78: #{tpu_custom_call.1} parent=1 // pred_check
      _
    $region79: #{tpu_custom_call.1} parent=1 // pred_check_branch
      %181 = sbr.rel (0) target = $region81
    $region80: #{tpu_custom_call.1} parent=1 // pred_region
      %183 = dma.done [#allocation6], 512
    $region81: #{tpu_custom_call.1} parent=1 // pred_fallthru
      _
    // Predicated region
    $region82: #{tpu_custom_call.1} parent=1 // pred_check
      _
    $region83: #{tpu_custom_call.1} parent=1 // pred_check_branch
      %185 = sbr.rel (0) target = $region85
    $region84: #{tpu_custom_call.1} parent=1 // pred_region
      %187 = dma.done [#allocation6], 512
    $region85: #{tpu_custom_call.1} parent=1 // pred_fallthru
      _
    // Predicated region
    $region86: #{tpu_custom_call.1} parent=1 // pred_check
      _
    $region87: #{tpu_custom_call.1} parent=1 // pred_check_branch
      %189 = sbr.rel (0) target = $region89
    $region88: #{tpu_custom_call.1} parent=1 // pred_region
      %191 = dma.done [#allocation9], 1024
    $region89: #{tpu_custom_call.1} parent=1 // pred_fallthru
      _
    // Predicated region
    $region90: #{tpu_custom_call.1} parent=1 // pred_check
      _
    $region91: #{tpu_custom_call.1} parent=1 // pred_check_branch
      %193 = sbr.rel (0) target = $region93
    $region92: #{tpu_custom_call.1} parent=1 // pred_region
      %195 = dma.done [#allocation9], 2048
    $region93: #{tpu_custom_call.1} parent=1 // pred_fallthru
      _
    // Predicated region
    $region94: #{tpu_custom_call.1} parent=1 // pred_check
      _
    $region95: #{tpu_custom_call.1} parent=1 // pred_check_branch
      %197 = sbr.rel (0) target = $region97
    $region96: #{tpu_custom_call.1} parent=1 // pred_region
      %199 = dma.done [#allocation12], 512
    $region97: #{tpu_custom_call.1} parent=1 // pred_fallthru
      _
    // Predicated region
    $region98: #{tpu_custom_call.1} parent=1 // pred_check
      _
    $region99: #{tpu_custom_call.1} parent=1 // pred_check_branch
      %201 = sbr.rel (0) target = $region101
    $region100: #{tpu_custom_call.1} parent=1 // pred_region
      %203 = dma.done [#allocation12], 3072
    $region101: #{tpu_custom_call.1} parent=1 // pred_fallthru
      _
    // Predicated region
    $region102: #{tpu_custom_call.1} parent=1 // pred_check
      _
    $region103: #{tpu_custom_call.1} parent=1 // pred_check_branch
      %205 = sbr.rel (0) target = $region105
    $region104: #{tpu_custom_call.1} parent=1 // pred_region
      %207 = dma.done [#allocation15], 7168
    $region105: #{tpu_custom_call.1} parent=1 // pred_fallthru
      _
    // Predicated region
    $region106: #{tpu_custom_call.1} parent=1 // pred_check
      _
    $region107: #{tpu_custom_call.1} parent=1 // pred_check_branch
      %209 = sbr.rel (0) target = $region109
    $region108: #{tpu_custom_call.1} parent=1 // pred_region
      %211 = dma.done [#allocation15], 1024
    $region109: #{tpu_custom_call.1} parent=1 // pred_fallthru
      _
    // Predicated region
    $region110: #{tpu_custom_call.1} parent=1 // pred_check
      _
    $region111: #{tpu_custom_call.1} parent=1 // pred_check_branch
      %213 = sbr.rel (0) target = $region113
    $region112: #{tpu_custom_call.1} parent=1 // pred_region
      %215 = dma.done [#allocation18], 4096
    $region113: #{tpu_custom_call.1} parent=1 // pred_fallthru
      _
    %v217 = vld [vmem:[#allocation2] sm:$0xff]
    %v218 = vld [vmem:[#allocation2 + $0x8] sm:$0xff]
    %v219 = vld [vmem:[#allocation2 + $0x10] sm:$0xff]
    %v220 = vld [vmem:[#allocation2 + $0x18] sm:$0xff]
    %v221 = vld [vmem:[%s1] sm:$0x1]
    %v222 = vld [vmem:[%s1 + $0x1] sm:$0x1]
    %v223 = vxor.u32 %v221, 2147483648
    %v224 = vxor.u32 %v222, 2147483648
    %v225 = vmul.f32 %v223, 1.442695
    %v226 = vpow.pop %v225
    %v227 = vmul.f32 %v224, 1.442695
    %v228 = vpow.pop %v227
    %v229 = vadd.f32 %v226, 1.0
    %v230 = vadd.f32 %v228, 1.0
    %v231 = vrcp.pop %v229
    %v232 = vmul.f32 %v229, %v231
    %v233 = vsub.f32 1.0, %v232
    %v234 = vmul.f32 %v231, %v233
    %v235 = vadd.f32 %v231, %v234
    %vm236 = vweird.f32 %v229
    %vm237 = vweird.f32 %v231
    %vm238 = vmor %vm236, %vm237
    %v239 = vsel %vm238, %v231, %v235
    %v240 = vand.u32 2147483647, %v229
    %vm241 = vcmp.eq.f32.partialorder %v240, 8.507059e+37
    %v242 = vand.u32 %v229, 2147483648
    %v243 = vor.u32 1.1754944e-38, %v242
    %v244 = vsel %vm241, %v243, %v239
    %v245 = vmul.f32 1.0, %v244
    %v246 = vrcp.pop %v230
    %v247 = vmul.f32 %v230, %v246
    %v248 = vsub.f32 1.0, %v247
    %v249 = vmul.f32 %v246, %v248
    %v250 = vadd.f32 %v246, %v249
    %vm251 = vweird.f32 %v230
    %vm252 = vweird.f32 %v246
    %vm253 = vmor %vm251, %vm252
    %v254 = vsel %vm253, %v246, %v250
    %v255 = vand.u32 2147483647, %v230
    %vm256 = vcmp.eq.f32.partialorder %v255, 8.507059e+37
    %v257 = vand.u32 %v230, 2147483648
    %v258 = vor.u32 1.1754944e-38, %v257
    %v259 = vsel %vm256, %v258, %v254
    %v260 = vmul.f32 1.0, %v259
    %v261 = vmul.f32 %v221, %v245
    %v262 = vmul.f32 %v222, %v260
    %v263 = vpack.c.bf16 %v261, %v261
    %v264 = vpack.c.bf16 %v262, %v262
    %v265 = vld [vmem:[#allocation13] sm:$0xff]
    %v266 = vld [vmem:[#allocation13 + $0x8] sm:$0xf]
    %v267 = vld [vmem:[#allocation13 + $0xc] sm:$0xff]
    %v268 = vld [vmem:[#allocation13 + $0x14] sm:$0xf]
    %v269 = vld [vmem:[#allocation13 + $0x18] sm:$0xff]
    %v270 = vld [vmem:[#allocation13 + $0x20] sm:$0xf]
    %v271 = vld [vmem:[#allocation13 + $0x24] sm:$0xff]
    %v272 = vld [vmem:[#allocation13 + $0x2c] sm:$0xf]
    %v273 = vld [vmem:[#allocation13 + $0x30] sm:$0xff]
    %v274 = vld [vmem:[#allocation13 + $0x38] sm:$0xf]
    %v275 = vld [vmem:[#allocation13 + $0x3c] sm:$0xff]
    %v276 = vld [vmem:[#allocation13 + $0x44] sm:$0xf]
    %v277 = vld [vmem:[#allocation13 + $0x48] sm:$0xff]
    %v278 = vld [vmem:[#allocation13 + $0x50] sm:$0xf]
    %v279 = vld [vmem:[#allocation13 + $0x54] sm:$0xff]
    %v280 = vld [vmem:[#allocation13 + $0x5c] sm:$0xf]
    %v281 = vld [vmem:[#allocation13 + $0x60] sm:$0xff]
    %v282 = vld [vmem:[#allocation13 + $0x68] sm:$0xf]
    %v283 = vld [vmem:[#allocation13 + $0x6c] sm:$0xff]
    %v284 = vld [vmem:[#allocation13 + $0x74] sm:$0xf]
    %v285 = vld [vmem:[#allocation13 + $0x78] sm:$0xff]
    %v286 = vld [vmem:[#allocation13 + $0x80] sm:$0xf]
    %v287 = vld [vmem:[#allocation13 + $0x84] sm:$0xff]
    %v288 = vld [vmem:[#allocation13 + $0x8c] sm:$0xf]
    %v289 = vld [vmem:[#allocation13 + $0x90] sm:$0xff]
    %v290 = vld [vmem:[#allocation13 + $0x98] sm:$0xf]
    %v291 = vld [vmem:[#allocation13 + $0x9c] sm:$0xff]
    %v292 = vld [vmem:[#allocation13 + $0xa4] sm:$0xf]
    %v293 = vld [vmem:[#allocation13 + $0xa8] sm:$0xff]
    %v294 = vld [vmem:[#allocation13 + $0xb0] sm:$0xf]
    %v295 = vld [vmem:[#allocation13 + $0xb4] sm:$0xff]
    %v296 = vld [vmem:[#allocation13 + $0xbc] sm:$0xf]
    %v297 = vld [vmem:[%s10] sm:$0x7]
    %v299 = vperm.slane %v297, 0
    %v300 = vperm.slane %v297, 1
    %v301 = vperm.slane %v297, 2
    %v307 = vunpack.c.l.b16 %v263
    %v308 = vunpack.c.l.b16 %v264
    %v309 = vrot.slane %v308, 7
    %vm310 = vcmask 1041409
    %v311 = vsel %vm310, %v309, %v307
    %v312 = vpack.c.b16 %v311, %v311
    %v346 = vunpack.c.l.b16 %v265
    %v347 = vunpack.c.h.b16 %v265
    %v348 = vunpack.c.l.b16 %v266
    %v349 = vunpack.c.l.b16 %v267
    %v350 = vunpack.c.h.b16 %v267
    %v351 = vunpack.c.l.b16 %v268
    %v352 = vunpack.c.l.b16 %v269
    %v353 = vunpack.c.h.b16 %v269
    %v354 = vunpack.c.l.b16 %v270
    %v355 = vunpack.c.l.b16 %v271
    %v356 = vunpack.c.h.b16 %v271
    %v357 = vunpack.c.l.b16 %v272
    %v358 = vunpack.c.l.b16 %v273
    %v359 = vunpack.c.h.b16 %v273
    %v360 = vunpack.c.l.b16 %v274
    %v361 = vunpack.c.l.b16 %v275
    %v362 = vunpack.c.h.b16 %v275
    %v363 = vunpack.c.l.b16 %v276
    %v364 = vunpack.c.l.b16 %v277
    %v365 = vunpack.c.h.b16 %v277
    %v366 = vunpack.c.l.b16 %v278
    %v367 = vunpack.c.l.b16 %v279
    %v368 = vunpack.c.h.b16 %v279
    %v369 = vunpack.c.l.b16 %v280
    %v370 = vunpack.c.l.b16 %v281
    %v371 = vunpack.c.h.b16 %v281
    %v372 = vunpack.c.l.b16 %v282
    %v373 = vunpack.c.l.b16 %v283
    %v374 = vunpack.c.h.b16 %v283
    %v375 = vunpack.c.l.b16 %v284
    %v376 = vunpack.c.l.b16 %v285
    %v377 = vunpack.c.h.b16 %v285
    %v378 = vunpack.c.l.b16 %v286
    %v379 = vunpack.c.l.b16 %v287
    %v380 = vunpack.c.h.b16 %v287
    %v381 = vunpack.c.l.b16 %v288
    %v382 = vunpack.c.l.b16 %v289
    %v383 = vunpack.c.h.b16 %v289
    %v384 = vunpack.c.l.b16 %v290
    %v385 = vunpack.c.l.b16 %v291
    %v386 = vunpack.c.h.b16 %v291
    %v387 = vunpack.c.l.b16 %v292
    %v388 = vunpack.c.l.b16 %v293
    %v389 = vunpack.c.h.b16 %v293
    %v390 = vunpack.c.l.b16 %v294
    %v391 = vunpack.c.l.b16 %v295
    %v392 = vunpack.c.h.b16 %v295
    %v393 = vunpack.c.l.b16 %v296
    %v394 = vpack.c.b16 %v349, %v346
    %v395 = vpack.c.b16 %v350, %v347
    %v396 = vpack.c.b16 %v351, %v348
    %v397 = vpack.c.b16 %v355, %v352
    %v398 = vpack.c.b16 %v356, %v353
    %v399 = vpack.c.b16 %v357, %v354
    %v400 = vpack.c.b16 %v361, %v358
    %v401 = vpack.c.b16 %v362, %v359
    %v402 = vpack.c.b16 %v363, %v360
    %v403 = vpack.c.b16 %v367, %v364
    %v404 = vpack.c.b16 %v368, %v365
    %v405 = vpack.c.b16 %v369, %v366
    %v406 = vpack.c.b16 %v373, %v370
    %v407 = vpack.c.b16 %v374, %v371
    %v408 = vpack.c.b16 %v375, %v372
    %v409 = vpack.c.b16 %v379, %v376
    %v410 = vpack.c.b16 %v380, %v377
    %v411 = vpack.c.b16 %v381, %v378
    %v412 = vpack.c.b16 %v385, %v382
    %v413 = vpack.c.b16 %v386, %v383
    %v414 = vpack.c.b16 %v387, %v384
    %v415 = vpack.c.b16 %v391, %v388
    %v416 = vpack.c.b16 %v392, %v389
    %v417 = vpack.c.b16 %v393, %v390
    %442 = vmatpush.bf16.msra.mxu0 %v415
    %443 = vmatpush.bf16.msra.mxu0 %v412
    %444 = vmatpush.bf16.msra.mxu0 %v409
    %445 = vmatpush.bf16.msra.mxu0 %v406
    %446 = vmatpush.bf16.msra.mxu0 %v403
    %447 = vmatpush.bf16.msra.mxu0 %v400
    %448 = vmatpush.bf16.msra.mxu0 %v397
    %449 = vmatpush.bf16.msra.mxu0 %v394
    %450 = vmatmul.bf16.gmra.mxu0 %v312
    %v451 = vpop.f32.mrf.mxu0
    %v452 = vadd.f32 %v299, %v451
    %v453 = vpop.f32.mrf.mxu0
    %454 = vdwg.mxu0
    %455 = vmatpush.bf16.msra.mxu0 %v416
    %456 = vmatpush.bf16.msra.mxu0 %v413
    %457 = vmatpush.bf16.msra.mxu0 %v410
    %458 = vmatpush.bf16.msra.mxu0 %v407
    %459 = vmatpush.bf16.msra.mxu0 %v404
    %460 = vmatpush.bf16.msra.mxu0 %v401
    %461 = vmatpush.bf16.msra.mxu0 %v398
    %462 = vmatpush.bf16.msra.mxu0 %v395
    %463 = vmatmul.bf16.gmra.mxu0 %v312
    %v464 = vpop.f32.mrf.mxu0
    %v465 = vadd.f32 %v300, %v464
    %v466 = vpop.f32.mrf.mxu0
    %467 = vdwg.mxu0
    %468 = vmatpush.bf16.msra.mxu0 %v417
    %469 = vmatpush.bf16.msra.mxu0 %v414
    %470 = vmatpush.bf16.msra.mxu0 %v411
    %471 = vmatpush.bf16.msra.mxu0 %v408
    %472 = vmatpush.bf16.msra.mxu0 %v405
    %473 = vmatpush.bf16.msra.mxu0 %v402
    %474 = vmatpush.bf16.msra.mxu0 %v399
    %475 = vmatpush.bf16.msra.mxu0 %v396
    %476 = vmatmul.bf16.gmra.mxu0 %v312
    %v477 = vpop.f32.mrf.mxu0
    %v478 = vadd.f32 %v301, %v477
    %v479 = vpop.f32.mrf.mxu0
    %480 = vdwg.mxu0
    %v482 = vrot.slane %v452, 1
    %v484 = vrot.slane %v465, 1
    %486 = vadd.xlane.f32.xlu0 %v217
    %v487 = vpop.xlane.xlu0 %486
    %488 = vadd.xlane.f32.xlu0 %v218
    %v489 = vpop.xlane.xlu0 %488
    %490 = vadd.xlane.f32.xlu0 %v219
    %v491 = vpop.xlane.xlu0 %490
    %492 = vadd.xlane.f32.xlu0 %v220
    %v493 = vpop.xlane.xlu0 %492
    %v494 = vrcp.pop 128.0
    %v495 = vmul.f32 128.0, %v494
    %v496 = vsub.f32 1.0, %v495
    %v497 = vmul.f32 %v494, %v496
    %v498 = vadd.f32 %v494, %v497
    %vm499 = vweird.f32 %v494
    %v500 = vsel %vm499, %v494, %v498
    %v501 = vmul.f32 %v487, %v500
    %v502 = vmul.f32 %v489, %v500
    %v503 = vmul.f32 %v491, %v500
    %v504 = vmul.f32 %v493, %v500
    %v505 = vsub.f32 %v217, %v501
    %v506 = vsub.f32 %v218, %v502
    %v507 = vsub.f32 %v219, %v503
    %v508 = vsub.f32 %v220, %v504
    %v509 = vmul.f32 %v505, %v505
    %v510 = vmul.f32 %v506, %v506
    %v511 = vmul.f32 %v507, %v507
    %v512 = vmul.f32 %v508, %v508
    %513 = vadd.xlane.f32.xlu0 %v509
    %v514 = vpop.xlane.xlu0 %513
    %515 = vadd.xlane.f32.xlu0 %v510
    %v516 = vpop.xlane.xlu0 %515
    %517 = vadd.xlane.f32.xlu0 %v511
    %v518 = vpop.xlane.xlu0 %517
    %519 = vadd.xlane.f32.xlu0 %v512
    %v520 = vpop.xlane.xlu0 %519
    %v521 = vmul.f32 %v514, %v500
    %v522 = vmul.f32 %v516, %v500
    %v523 = vmul.f32 %v518, %v500
    %v524 = vmul.f32 %v520, %v500
    %v525 = vadd.f32 %v521, 1e-06
    %v526 = vadd.f32 %v522, 1e-06
    %v527 = vadd.f32 %v523, 1e-06
    %v528 = vadd.f32 %v524, 1e-06
    %v529 = vrsqrt.pop %v525
    %v530 = vmul.f32 %v529, %v525
    %v531 = vmul.f32 %v530, %v529
    %v532 = vmul.f32 0.5, %v531
    %v533 = vsub.f32 1.5, %v532
    %v534 = vmul.f32 %v529, %v533
    %vm535 = vweird.f32 %v525
    %vm536 = vweird.f32 %v529
    %vm537 = vmor %vm535, %vm536
    %v538 = vsel %vm537, %v529, %v534
    %v539 = vrsqrt.pop %v526
    %v540 = vmul.f32 %v539, %v526
    %v541 = vmul.f32 %v540, %v539
    %v542 = vmul.f32 0.5, %v541
    %v543 = vsub.f32 1.5, %v542
    %v544 = vmul.f32 %v539, %v543
    %vm545 = vweird.f32 %v526
    %vm546 = vweird.f32 %v539
    %vm547 = vmor %vm545, %vm546
    %v548 = vsel %vm547, %v539, %v544
    %v549 = vrsqrt.pop %v527
    %v550 = vmul.f32 %v549, %v527
    %v551 = vmul.f32 %v550, %v549
    %v552 = vmul.f32 0.5, %v551
    %v553 = vsub.f32 1.5, %v552
    %v554 = vmul.f32 %v549, %v553
    %vm555 = vweird.f32 %v527
    %vm556 = vweird.f32 %v549
    %vm557 = vmor %vm555, %vm556
    %v558 = vsel %vm557, %v549, %v554
    %v559 = vrsqrt.pop %v528
    %v560 = vmul.f32 %v559, %v528
    %v561 = vmul.f32 %v560, %v559
    %v562 = vmul.f32 0.5, %v561
    %v563 = vsub.f32 1.5, %v562
    %v564 = vmul.f32 %v559, %v563
    %vm565 = vweird.f32 %v528
    %vm566 = vweird.f32 %v559
    %vm567 = vmor %vm565, %vm566
    %v568 = vsel %vm567, %v559, %v564
    %v569 = vmul.f32 %v505, %v538
    %v570 = vmul.f32 %v506, %v548
    %v571 = vmul.f32 %v507, %v558
    %v572 = vmul.f32 %v508, %v568
    %v573 = vadd.f32 %v465, 1.0
    %v574 = vadd.f32 %v484, 1.0
    %v577 = vperm.slane %v573, 0
    %v578 = vperm.slane %v574, 0
    %v581 = vmul.f32 %v577, %v569
    %v582 = vmul.f32 %v577, %v570
    %v583 = vmul.f32 %v578, %v571
    %v584 = vmul.f32 %v578, %v572
    %v585 = vperm.slane %v452, 0
    %v586 = vperm.slane %v482, 0
    %v589 = vadd.f32 %v581, %v585
    %v590 = vadd.f32 %v582, %v585
    %v591 = vadd.f32 %v583, %v586
    %v592 = vadd.f32 %v584, %v586
    %v593 = vpack.c.bf16 %v590, %v589
    %v594 = vpack.c.bf16 %v592, %v591
    %v595 = vld [vmem:[#allocation14] sm:$0xff]
    %v596 = vld [vmem:[#allocation14 + $0x8] sm:$0xff]
    %v597 = vld [vmem:[#allocation14 + $0x10] sm:$0xff]
    %v598 = vld [vmem:[#allocation14 + $0x18] sm:$0xf]
    %v599 = vld [vmem:[#allocation14 + $0x1c] sm:$0xff]
    %v600 = vld [vmem:[#allocation14 + $0x24] sm:$0xff]
    %v601 = vld [vmem:[#allocation14 + $0x2c] sm:$0xff]
    %v602 = vld [vmem:[#allocation14 + $0x34] sm:$0xf]
    %v603 = vld [vmem:[#allocation14 + $0x38] sm:$0xff]
    %v604 = vld [vmem:[#allocation14 + $0x40] sm:$0xff]
    %v605 = vld [vmem:[#allocation14 + $0x48] sm:$0xff]
    %v606 = vld [vmem:[#allocation14 + $0x50] sm:$0xf]
    %v607 = vld [vmem:[#allocation14 + $0x54] sm:$0xff]
    %v608 = vld [vmem:[#allocation14 + $0x5c] sm:$0xff]
    %v609 = vld [vmem:[#allocation14 + $0x64] sm:$0xff]
    %v610 = vld [vmem:[#allocation14 + $0x6c] sm:$0xf]
    %v611 = vld [vmem:[#allocation14 + $0x70] sm:$0xff]
    %v612 = vld [vmem:[#allocation14 + $0x78] sm:$0xff]
    %v613 = vld [vmem:[#allocation14 + $0x80] sm:$0xff]
    %v614 = vld [vmem:[#allocation14 + $0x88] sm:$0xf]
    %v615 = vld [vmem:[#allocation14 + $0x8c] sm:$0xff]
    %v616 = vld [vmem:[#allocation14 + $0x94] sm:$0xff]
    %v617 = vld [vmem:[#allocation14 + $0x9c] sm:$0xff]
    %v618 = vld [vmem:[#allocation14 + $0xa4] sm:$0xf]
    %v619 = vld [vmem:[#allocation14 + $0xa8] sm:$0xff]
    %v620 = vld [vmem:[#allocation14 + $0xb0] sm:$0xff]
    %v621 = vld [vmem:[#allocation14 + $0xb8] sm:$0xff]
    %v622 = vld [vmem:[#allocation14 + $0xc0] sm:$0xf]
    %v623 = vld [vmem:[#allocation14 + $0xc4] sm:$0xff]
    %v624 = vld [vmem:[#allocation14 + $0xcc] sm:$0xff]
    %v625 = vld [vmem:[#allocation14 + $0xd4] sm:$0xff]
    %v626 = vld [vmem:[#allocation14 + $0xdc] sm:$0xf]
    %v627 = vld [vmem:[#allocation14 + $0xe0] sm:$0xff]
    %v628 = vld [vmem:[#allocation14 + $0xe8] sm:$0xff]
    %v629 = vld [vmem:[#allocation14 + $0xf0] sm:$0xff]
    %v630 = vld [vmem:[#allocation14 + $0xf8] sm:$0xf]
    %v631 = vld [vmem:[#allocation14 + $0xfc] sm:$0xff]
    %v632 = vld [vmem:[#allocation14 + $0x104] sm:$0xff]
    %v633 = vld [vmem:[#allocation14 + $0x10c] sm:$0xff]
    %v634 = vld [vmem:[#allocation14 + $0x114] sm:$0xf]
    %v635 = vld [vmem:[#allocation14 + $0x118] sm:$0xff]
    %v636 = vld [vmem:[#allocation14 + $0x120] sm:$0xff]
    %v637 = vld [vmem:[#allocation14 + $0x128] sm:$0xff]
    %v638 = vld [vmem:[#allocation14 + $0x130] sm:$0xf]
    %v639 = vld [vmem:[#allocation14 + $0x134] sm:$0xff]
    %v640 = vld [vmem:[#allocation14 + $0x13c] sm:$0xff]
    %v641 = vld [vmem:[#allocation14 + $0x144] sm:$0xff]
    %v642 = vld [vmem:[#allocation14 + $0x14c] sm:$0xf]
    %v643 = vld [vmem:[#allocation14 + $0x150] sm:$0xff]
    %v644 = vld [vmem:[#allocation14 + $0x158] sm:$0xff]
    %v645 = vld [vmem:[#allocation14 + $0x160] sm:$0xff]
    %v646 = vld [vmem:[#allocation14 + $0x168] sm:$0xf]
    %v647 = vld [vmem:[#allocation14 + $0x16c] sm:$0xff]
    %v648 = vld [vmem:[#allocation14 + $0x174] sm:$0xff]
    %v649 = vld [vmem:[#allocation14 + $0x17c] sm:$0xff]
    %v650 = vld [vmem:[#allocation14 + $0x184] sm:$0xf]
    %v651 = vld [vmem:[#allocation14 + $0x188] sm:$0xff]
    %v652 = vld [vmem:[#allocation14 + $0x190] sm:$0xff]
    %v653 = vld [vmem:[#allocation14 + $0x198] sm:$0xff]
    %v654 = vld [vmem:[#allocation14 + $0x1a0] sm:$0xf]
    %v655 = vld [vmem:[#allocation14 + $0x1a4] sm:$0xff]
    %v656 = vld [vmem:[#allocation14 + $0x1ac] sm:$0xff]
    %v657 = vld [vmem:[#allocation14 + $0x1b4] sm:$0xff]
    %v658 = vld [vmem:[#allocation14 + $0x1bc] sm:$0xf]
    %v659 = vld [vmem:[%s12] sm:$0xff]
    %v661 = vperm.slane %v659, 0
    %v662 = vperm.slane %v659, 1
    %v663 = vperm.slane %v659, 2
    %v664 = vperm.slane %v659, 3
    %v665 = vperm.slane %v659, 4
    %v666 = vperm.slane %v659, 5
    %v667 = vperm.slane %v659, 6
    %v739 = vunpack.c.l.b16 %v595
    %v740 = vunpack.c.h.b16 %v595
    %v741 = vunpack.c.l.b16 %v596
    %v742 = vunpack.c.h.b16 %v596
    %v743 = vunpack.c.l.b16 %v597
    %v744 = vunpack.c.h.b16 %v597
    %v745 = vunpack.c.l.b16 %v598
    %v746 = vunpack.c.l.b16 %v599
    %v747 = vunpack.c.h.b16 %v599
    %v748 = vunpack.c.l.b16 %v600
    %v749 = vunpack.c.h.b16 %v600
    %v750 = vunpack.c.l.b16 %v601
    %v751 = vunpack.c.h.b16 %v601
    %v752 = vunpack.c.l.b16 %v602
    %v753 = vunpack.c.l.b16 %v603
    %v754 = vunpack.c.h.b16 %v603
    %v755 = vunpack.c.l.b16 %v604
    %v756 = vunpack.c.h.b16 %v604
    %v757 = vunpack.c.l.b16 %v605
    %v758 = vunpack.c.h.b16 %v605
    %v759 = vunpack.c.l.b16 %v606
    %v760 = vunpack.c.l.b16 %v607
    %v761 = vunpack.c.h.b16 %v607
    %v762 = vunpack.c.l.b16 %v608
    %v763 = vunpack.c.h.b16 %v608
    %v764 = vunpack.c.l.b16 %v609
    %v765 = vunpack.c.h.b16 %v609
    %v766 = vunpack.c.l.b16 %v610
    %v767 = vunpack.c.l.b16 %v611
    %v768 = vunpack.c.h.b16 %v611
    %v769 = vunpack.c.l.b16 %v612
    %v770 = vunpack.c.h.b16 %v612
    %v771 = vunpack.c.l.b16 %v613
    %v772 = vunpack.c.h.b16 %v613
    %v773 = vunpack.c.l.b16 %v614
    %v774 = vunpack.c.l.b16 %v615
    %v775 = vunpack.c.h.b16 %v615
    %v776 = vunpack.c.l.b16 %v616
    %v777 = vunpack.c.h.b16 %v616
    %v778 = vunpack.c.l.b16 %v617
    %v779 = vunpack.c.h.b16 %v617
    %v780 = vunpack.c.l.b16 %v618
    %v781 = vunpack.c.l.b16 %v619
    %v782 = vunpack.c.h.b16 %v619
    %v783 = vunpack.c.l.b16 %v620
    %v784 = vunpack.c.h.b16 %v620
    %v785 = vunpack.c.l.b16 %v621
    %v786 = vunpack.c.h.b16 %v621
    %v787 = vunpack.c.l.b16 %v622
    %v788 = vunpack.c.l.b16 %v623
    %v789 = vunpack.c.h.b16 %v623
    %v790 = vunpack.c.l.b16 %v624
    %v791 = vunpack.c.h.b16 %v624
    %v792 = vunpack.c.l.b16 %v625
    %v793 = vunpack.c.h.b16 %v625
    %v794 = vunpack.c.l.b16 %v626
    %v795 = vunpack.c.l.b16 %v627
    %v796 = vunpack.c.h.b16 %v627
    %v797 = vunpack.c.l.b16 %v628
    %v798 = vunpack.c.h.b16 %v628
    %v799 = vunpack.c.l.b16 %v629
    %v800 = vunpack.c.h.b16 %v629
    %v801 = vunpack.c.l.b16 %v630
    %v802 = vunpack.c.l.b16 %v631
    %v803 = vunpack.c.h.b16 %v631
    %v804 = vunpack.c.l.b16 %v632
    %v805 = vunpack.c.h.b16 %v632
    %v806 = vunpack.c.l.b16 %v633
    %v807 = vunpack.c.h.b16 %v633
    %v808 = vunpack.c.l.b16 %v634
    %v809 = vunpack.c.l.b16 %v635
    %v810 = vunpack.c.h.b16 %v635
    %v811 = vunpack.c.l.b16 %v636
    %v812 = vunpack.c.h.b16 %v636
    %v813 = vunpack.c.l.b16 %v637
    %v814 = vunpack.c.h.b16 %v637
    %v815 = vunpack.c.l.b16 %v638
    %v816 = vunpack.c.l.b16 %v639
    %v817 = vunpack.c.h.b16 %v639
    %v818 = vunpack.c.l.b16 %v640
    %v819 = vunpack.c.h.b16 %v640
    %v820 = vunpack.c.l.b16 %v641
    %v821 = vunpack.c.h.b16 %v641
    %v822 = vunpack.c.l.b16 %v642
    %v823 = vunpack.c.l.b16 %v643
    %v824 = vunpack.c.h.b16 %v643
    %v825 = vunpack.c.l.b16 %v644
    %v826 = vunpack.c.h.b16 %v644
    %v827 = vunpack.c.l.b16 %v645
    %v828 = vunpack.c.h.b16 %v645
    %v829 = vunpack.c.l.b16 %v646
    %v830 = vunpack.c.l.b16 %v647
    %v831 = vunpack.c.h.b16 %v647
    %v832 = vunpack.c.l.b16 %v648
    %v833 = vunpack.c.h.b16 %v648
    %v834 = vunpack.c.l.b16 %v649
    %v835 = vunpack.c.h.b16 %v649
    %v836 = vunpack.c.l.b16 %v650
    %v837 = vunpack.c.l.b16 %v651
    %v838 = vunpack.c.h.b16 %v651
    %v839 = vunpack.c.l.b16 %v652
    %v840 = vunpack.c.h.b16 %v652
    %v841 = vunpack.c.l.b16 %v653
    %v842 = vunpack.c.h.b16 %v653
    %v843 = vunpack.c.l.b16 %v654
    %v844 = vunpack.c.l.b16 %v655
    %v845 = vunpack.c.h.b16 %v655
    %v846 = vunpack.c.l.b16 %v656
    %v847 = vunpack.c.h.b16 %v656
    %v848 = vunpack.c.l.b16 %v657
    %v849 = vunpack.c.h.b16 %v657
    %v850 = vunpack.c.l.b16 %v658
    %v851 = vpack.c.b16 %v746, %v739
    %v852 = vpack.c.b16 %v747, %v740
    %v853 = vpack.c.b16 %v748, %v741
    %v854 = vpack.c.b16 %v749, %v742
    %v855 = vpack.c.b16 %v750, %v743
    %v856 = vpack.c.b16 %v751, %v744
    %v857 = vpack.c.b16 %v752, %v745
    %v858 = vpack.c.b16 %v760, %v753
    %v859 = vpack.c.b16 %v761, %v754
    %v860 = vpack.c.b16 %v762, %v755
    %v861 = vpack.c.b16 %v763, %v756
    %v862 = vpack.c.b16 %v764, %v757
    %v863 = vpack.c.b16 %v765, %v758
    %v864 = vpack.c.b16 %v766, %v759
    %v865 = vpack.c.b16 %v774, %v767
    %v866 = vpack.c.b16 %v775, %v768
    %v867 = vpack.c.b16 %v776, %v769
    %v868 = vpack.c.b16 %v777, %v770
    %v869 = vpack.c.b16 %v778, %v771
    %v870 = vpack.c.b16 %v779, %v772
    %v871 = vpack.c.b16 %v780, %v773
    %v872 = vpack.c.b16 %v788, %v781
    %v873 = vpack.c.b16 %v789, %v782
    %v874 = vpack.c.b16 %v790, %v783
    %v875 = vpack.c.b16 %v791, %v784
    %v876 = vpack.c.b16 %v792, %v785
    %v877 = vpack.c.b16 %v793, %v786
    %v878 = vpack.c.b16 %v794, %v787
    %v879 = vpack.c.b16 %v802, %v795
    %v880 = vpack.c.b16 %v803, %v796
    %v881 = vpack.c.b16 %v804, %v797
    %v882 = vpack.c.b16 %v805, %v798
    %v883 = vpack.c.b16 %v806, %v799
    %v884 = vpack.c.b16 %v807, %v800
    %v885 = vpack.c.b16 %v808, %v801
    %v886 = vpack.c.b16 %v816, %v809
    %v887 = vpack.c.b16 %v817, %v810
    %v888 = vpack.c.b16 %v818, %v811
    %v889 = vpack.c.b16 %v819, %v812
    %v890 = vpack.c.b16 %v820, %v813
    %v891 = vpack.c.b16 %v821, %v814
    %v892 = vpack.c.b16 %v822, %v815
    %v893 = vpack.c.b16 %v830, %v823
    %v894 = vpack.c.b16 %v831, %v824
    %v895 = vpack.c.b16 %v832, %v825
    %v896 = vpack.c.b16 %v833, %v826
    %v897 = vpack.c.b16 %v834, %v827
    %v898 = vpack.c.b16 %v835, %v828
    %v899 = vpack.c.b16 %v836, %v829
    %v900 = vpack.c.b16 %v844, %v837
    %v901 = vpack.c.b16 %v845, %v838
    %v902 = vpack.c.b16 %v846, %v839
    %v903 = vpack.c.b16 %v847, %v840
    %v904 = vpack.c.b16 %v848, %v841
    %v905 = vpack.c.b16 %v849, %v842
    %v906 = vpack.c.b16 %v850, %v843
    %963 = vmatpush.bf16.msra.mxu0 %v900
    %964 = vmatpush.bf16.msra.mxu0 %v893
    %965 = vmatpush.bf16.msra.mxu0 %v886
    %966 = vmatpush.bf16.msra.mxu0 %v879
    %967 = vmatpush.bf16.msra.mxu0 %v872
    %968 = vmatpush.bf16.msra.mxu0 %v865
    %969 = vmatpush.bf16.msra.mxu0 %v858
    %970 = vmatpush.bf16.msra.mxu0 %v851
    %971 = vmatmul.bf16.gmra.mxu0 %v593
    %v972 = vpop.f32.mrf.mxu0
    %v973 = vadd.f32 %v661, %v972
    %v974 = vpop.f32.mrf.mxu0
    %v975 = vadd.f32 %v661, %v974
    %976 = vmatmul.bf16.gmra.mxu0 %v594
    %v977 = vpop.f32.mrf.mxu0
    %v978 = vadd.f32 %v661, %v977
    %v979 = vpop.f32.mrf.mxu0
    %v980 = vadd.f32 %v661, %v979
    %981 = vdwg.mxu0
    %982 = vmatpush.bf16.msra.mxu0 %v901
    %983 = vmatpush.bf16.msra.mxu0 %v894
    %984 = vmatpush.bf16.msra.mxu0 %v887
    %985 = vmatpush.bf16.msra.mxu0 %v880
    %986 = vmatpush.bf16.msra.mxu0 %v873
    %987 = vmatpush.bf16.msra.mxu0 %v866
    %988 = vmatpush.bf16.msra.mxu0 %v859
    %989 = vmatpush.bf16.msra.mxu0 %v852
    %990 = vmatmul.bf16.gmra.mxu0 %v593
    %v991 = vpop.f32.mrf.mxu0
    %v992 = vadd.f32 %v662, %v991
    %v993 = vpop.f32.mrf.mxu0
    %v994 = vadd.f32 %v662, %v993
    %995 = vmatmul.bf16.gmra.mxu0 %v594
    %v996 = vpop.f32.mrf.mxu0
    %v997 = vadd.f32 %v662, %v996
    %v998 = vpop.f32.mrf.mxu0
    %v999 = vadd.f32 %v662, %v998
    %1000 = vdwg.mxu0
    %1001 = vmatpush.bf16.msra.mxu0 %v902
    %1002 = vmatpush.bf16.msra.mxu0 %v895
    %1003 = vmatpush.bf16.msra.mxu0 %v888
    %1004 = vmatpush.bf16.msra.mxu0 %v881
    %1005 = vmatpush.bf16.msra.mxu0 %v874
    %1006 = vmatpush.bf16.msra.mxu0 %v867
    %1007 = vmatpush.bf16.msra.mxu0 %v860
    %1008 = vmatpush.bf16.msra.mxu0 %v853
    %1009 = vmatmul.bf16.gmra.mxu0 %v593
    %v1010 = vpop.f32.mrf.mxu0
    %v1011 = vadd.f32 %v663, %v1010
    %v1012 = vpop.f32.mrf.mxu0
    %v1013 = vadd.f32 %v663, %v1012
    %1014 = vmatmul.bf16.gmra.mxu0 %v594
    %v1015 = vpop.f32.mrf.mxu0
    %v1016 = vadd.f32 %v663, %v1015
    %v1017 = vpop.f32.mrf.mxu0
    %v1018 = vadd.f32 %v663, %v1017
    %1019 = vdwg.mxu0
    %1020 = vmatpush.bf16.msra.mxu0 %v903
    %1021 = vmatpush.bf16.msra.mxu0 %v896
    %1022 = vmatpush.bf16.msra.mxu0 %v889
    %1023 = vmatpush.bf16.msra.mxu0 %v882
    %1024 = vmatpush.bf16.msra.mxu0 %v875
    %1025 = vmatpush.bf16.msra.mxu0 %v868
    %1026 = vmatpush.bf16.msra.mxu0 %v861
    %1027 = vmatpush.bf16.msra.mxu0 %v854
    %1028 = vmatmul.bf16.gmra.mxu0 %v593
    %v1029 = vpop.f32.mrf.mxu0
    %v1030 = vadd.f32 %v664, %v1029
    %v1031 = vpop.f32.mrf.mxu0
    %v1032 = vadd.f32 %v664, %v1031
    %1033 = vmatmul.bf16.gmra.mxu0 %v594
    %v1034 = vpop.f32.mrf.mxu0
    %v1035 = vadd.f32 %v664, %v1034
    %v1036 = vpop.f32.mrf.mxu0
    %v1037 = vadd.f32 %v664, %v1036
    %1038 = vdwg.mxu0
    %1039 = vmatpush.bf16.msra.mxu0 %v904
    %1040 = vmatpush.bf16.msra.mxu0 %v897
    %1041 = vmatpush.bf16.msra.mxu0 %v890
    %1042 = vmatpush.bf16.msra.mxu0 %v883
    %1043 = vmatpush.bf16.msra.mxu0 %v876
    %1044 = vmatpush.bf16.msra.mxu0 %v869
    %1045 = vmatpush.bf16.msra.mxu0 %v862
    %1046 = vmatpush.bf16.msra.mxu0 %v855
    %1047 = vmatmul.bf16.gmra.mxu0 %v593
    %v1048 = vpop.f32.mrf.mxu0
    %v1049 = vadd.f32 %v665, %v1048
    %v1050 = vpop.f32.mrf.mxu0
    %v1051 = vadd.f32 %v665, %v1050
    %1052 = vmatmul.bf16.gmra.mxu0 %v594
    %v1053 = vpop.f32.mrf.mxu0
    %v1054 = vadd.f32 %v665, %v1053
    %v1055 = vpop.f32.mrf.mxu0
    %v1056 = vadd.f32 %v665, %v1055
    %1057 = vdwg.mxu0
    %1058 = vmatpush.bf16.msra.mxu0 %v905
    %1059 = vmatpush.bf16.msra.mxu0 %v898
    %1060 = vmatpush.bf16.msra.mxu0 %v891
    %1061 = vmatpush.bf16.msra.mxu0 %v884
    %1062 = vmatpush.bf16.msra.mxu0 %v877
    %1063 = vmatpush.bf16.msra.mxu0 %v870
    %1064 = vmatpush.bf16.msra.mxu0 %v863
    %1065 = vmatpush.bf16.msra.mxu0 %v856
    %1066 = vmatmul.bf16.gmra.mxu0 %v593
    %v1067 = vpop.f32.mrf.mxu0
    %v1068 = vadd.f32 %v666, %v1067
    %v1069 = vpop.f32.mrf.mxu0
    %v1070 = vadd.f32 %v666, %v1069
    %1071 = vmatmul.bf16.gmra.mxu0 %v594
    %v1072 = vpop.f32.mrf.mxu0
    %v1073 = vadd.f32 %v666, %v1072
    %v1074 = vpop.f32.mrf.mxu0
    %v1075 = vadd.f32 %v666, %v1074
    %1076 = vdwg.mxu0
    %1077 = vmatpush.bf16.msra.mxu0 %v906
    %1078 = vmatpush.bf16.msra.mxu0 %v899
    %1079 = vmatpush.bf16.msra.mxu0 %v892
    %1080 = vmatpush.bf16.msra.mxu0 %v885
    %1081 = vmatpush.bf16.msra.mxu0 %v878
    %1082 = vmatpush.bf16.msra.mxu0 %v871
    %1083 = vmatpush.bf16.msra.mxu0 %v864
    %1084 = vmatpush.bf16.msra.mxu0 %v857
    %1085 = vmatmul.bf16.gmra.mxu0 %v593
    %v1086 = vpop.f32.mrf.mxu0
    %v1087 = vadd.f32 %v667, %v1086
    %v1088 = vpop.f32.mrf.mxu0
    %v1089 = vadd.f32 %v667, %v1088
    %1090 = vmatmul.bf16.gmra.mxu0 %v594
    %v1091 = vpop.f32.mrf.mxu0
    %v1092 = vadd.f32 %v667, %v1091
    %v1093 = vpop.f32.mrf.mxu0
    %v1094 = vadd.f32 %v667, %v1093
    %1095 = vdwg.mxu0
    %v1096 = vld [vmem:[#allocation8] sm:$0xf]
    %v1097 = vld [vmem:[#allocation8 + $0x4] sm:$0xf]
    %v1098 = vld [vmem:[#allocation8 + $0x8] sm:$0xf]
    %v1099 = vld [vmem:[#allocation8 + $0xc] sm:$0xf]
    %v1100 = vld [vmem:[#allocation8 + $0x10] sm:$0xf]
    %v1101 = vld [vmem:[#allocation8 + $0x14] sm:$0xf]
    %v1102 = vld [vmem:[#allocation8 + $0x18] sm:$0xf]
    %v1103 = vld [vmem:[#allocation8 + $0x1c] sm:$0xf]
    %v1104 = vld [vmem:[#allocation8 + $0x20] sm:$0xf]
    %v1105 = vld [vmem:[#allocation8 + $0x24] sm:$0xf]
    %v1106 = vld [vmem:[#allocation8 + $0x28] sm:$0xf]
    %v1107 = vld [vmem:[#allocation8 + $0x2c] sm:$0xf]
    %v1108 = vld [vmem:[#allocation8 + $0x30] sm:$0xf]
    %v1109 = vld [vmem:[#allocation8 + $0x34] sm:$0xf]
    %v1110 = vld [vmem:[#allocation8 + $0x38] sm:$0xf]
    %v1111 = vld [vmem:[#allocation8 + $0x3c] sm:$0xf]
    %v1112 = vld [vmem:[%s4] sm:$0xf]
    %v1113 = vld [vmem:[%s4 + $0x4] sm:$0xf]
    %v1114 = vld [vmem:[%s4 + $0x8] sm:$0xf]
    %v1115 = vld [vmem:[%s4 + $0xc] sm:$0xf]
    %v1116 = vld [vmem:[%s4 + $0x10] sm:$0xf]
    %v1117 = vld [vmem:[%s4 + $0x14] sm:$0xf]
    %v1118 = vld [vmem:[%s4 + $0x18] sm:$0xf]
    %v1119 = vld [vmem:[%s4 + $0x1c] sm:$0xf]
    %v1120 = vld [vmem:[%s4 + $0x20] sm:$0xf]
    %v1121 = vld [vmem:[%s4 + $0x24] sm:$0xf]
    %v1122 = vld [vmem:[%s4 + $0x28] sm:$0xf]
    %v1123 = vld [vmem:[%s4 + $0x2c] sm:$0xf]
    %v1124 = vld [vmem:[%s4 + $0x30] sm:$0xf]
    %v1125 = vld [vmem:[%s4 + $0x34] sm:$0xf]
    %v1126 = vld [vmem:[%s4 + $0x38] sm:$0xf]
    %v1127 = vld [vmem:[%s4 + $0x3c] sm:$0xf]
    %v1128 = vld [vmem:[#allocation5] sm:$0xff]
    %v1129 = vld [vmem:[#allocation5 + $0x8] sm:$0xff]
    %v1130 = vld [vmem:[#allocation5 + $0x10] sm:$0xff]
    %v1131 = vld [vmem:[#allocation5 + $0x18] sm:$0xff]
    %v1132 = vld [vmem:[#allocation7] sm:$0xff]
    %v1133 = vld [vmem:[#allocation7 + $0x8] sm:$0xff]
    %v1134 = vld [vmem:[#allocation7 + $0x10] sm:$0xff]
    %v1135 = vld [vmem:[#allocation7 + $0x18] sm:$0xff]
    %v1136 = vld [vmem:[%s13] sm:$0x1]
    %v1137 = vmul.f32 %v973, %v973
    %v1138 = vmul.f32 %v975, %v975
    %v1139 = vmul.f32 %v978, %v978
    %v1140 = vmul.f32 %v980, %v980
    %v1141 = vpack.c.bf16 %v1138, %v1137
    %v1142 = vpack.c.bf16 %v1140, %v1139
    %v1159 = vunpack.c.l.b16 %v1096
    %v1160 = vunpack.c.l.b16 %v1097
    %v1161 = vunpack.c.l.b16 %v1098
    %v1162 = vunpack.c.l.b16 %v1099
    %v1163 = vunpack.c.l.b16 %v1100
    %v1164 = vunpack.c.l.b16 %v1101
    %v1165 = vunpack.c.l.b16 %v1102
    %v1166 = vunpack.c.l.b16 %v1103
    %v1167 = vunpack.c.l.b16 %v1104
    %v1168 = vunpack.c.l.b16 %v1105
    %v1169 = vunpack.c.l.b16 %v1106
    %v1170 = vunpack.c.l.b16 %v1107
    %v1171 = vunpack.c.l.b16 %v1108
    %v1172 = vunpack.c.l.b16 %v1109
    %v1173 = vunpack.c.l.b16 %v1110
    %v1174 = vunpack.c.l.b16 %v1111
    %v1175 = vpack.c.b16 %v1160, %v1159
    %v1176 = vpack.c.b16 %v1162, %v1161
    %v1177 = vpack.c.b16 %v1164, %v1163
    %v1178 = vpack.c.b16 %v1166, %v1165
    %v1179 = vpack.c.b16 %v1168, %v1167
    %v1180 = vpack.c.b16 %v1170, %v1169
    %v1181 = vpack.c.b16 %v1172, %v1171
    %v1182 = vpack.c.b16 %v1174, %v1173
    %1191 = vmatpush.bf16.msra.mxu0 %v1182
    %1192 = vmatpush.bf16.msra.mxu0 %v1181
    %1193 = vmatpush.bf16.msra.mxu0 %v1180
    %1194 = vmatpush.bf16.msra.mxu0 %v1179
    %1195 = vmatpush.bf16.msra.mxu0 %v1178
    %1196 = vmatpush.bf16.msra.mxu0 %v1177
    %1197 = vmatpush.bf16.msra.mxu0 %v1176
    %1198 = vmatpush.bf16.msra.mxu0 %v1175
    %1199 = vmatmul.bf16.gmra.mxu0 %v1141
    %v1200 = vpop.f32.mrf.mxu0
    %v1201 = vadd.f32 1e-06, %v1200
    %v1202 = vpop.f32.mrf.mxu0
    %v1203 = vadd.f32 1e-06, %v1202
    %1204 = vmatmul.bf16.gmra.mxu0 %v1142
    %v1205 = vpop.f32.mrf.mxu0
    %v1206 = vadd.f32 1e-06, %v1205
    %v1207 = vpop.f32.mrf.mxu0
    %v1208 = vadd.f32 1e-06, %v1207
    %1209 = vdwg.mxu0
    %v1210 = vrsqrt.pop %v1201
    %v1211 = vmul.f32 %v1210, %v1201
    %v1212 = vmul.f32 %v1211, %v1210
    %v1213 = vmul.f32 0.5, %v1212
    %v1214 = vsub.f32 1.5, %v1213
    %v1215 = vmul.f32 %v1210, %v1214
    %vm1216 = vweird.f32 %v1201
    %vm1217 = vweird.f32 %v1210
    %vm1218 = vmor %vm1216, %vm1217
    %v1219 = vsel %vm1218, %v1210, %v1215
    %v1220 = vrsqrt.pop %v1203
    %v1221 = vmul.f32 %v1220, %v1203
    %v1222 = vmul.f32 %v1221, %v1220
    %v1223 = vmul.f32 0.5, %v1222
    %v1224 = vsub.f32 1.5, %v1223
    %v1225 = vmul.f32 %v1220, %v1224
    %vm1226 = vweird.f32 %v1203
    %vm1227 = vweird.f32 %v1220
    %vm1228 = vmor %vm1226, %vm1227
    %v1229 = vsel %vm1228, %v1220, %v1225
    %v1230 = vrsqrt.pop %v1206
    %v1231 = vmul.f32 %v1230, %v1206
    %v1232 = vmul.f32 %v1231, %v1230
    %v1233 = vmul.f32 0.5, %v1232
    %v1234 = vsub.f32 1.5, %v1233
    %v1235 = vmul.f32 %v1230, %v1234
    %vm1236 = vweird.f32 %v1206
    %vm1237 = vweird.f32 %v1230
    %vm1238 = vmor %vm1236, %vm1237
    %v1239 = vsel %vm1238, %v1230, %v1235
    %v1240 = vrsqrt.pop %v1208
    %v1241 = vmul.f32 %v1240, %v1208
    %v1242 = vmul.f32 %v1241, %v1240
    %v1243 = vmul.f32 0.5, %v1242
    %v1244 = vsub.f32 1.5, %v1243
    %v1245 = vmul.f32 %v1240, %v1244
    %vm1246 = vweird.f32 %v1208
    %vm1247 = vweird.f32 %v1240
    %vm1248 = vmor %vm1246, %vm1247
    %v1249 = vsel %vm1248, %v1240, %v1245
    %v1250 = vmul.f32 %v973, %v1219
    %v1251 = vmul.f32 %v975, %v1229
    %v1252 = vmul.f32 %v978, %v1239
    %v1253 = vmul.f32 %v980, %v1249
    %v1255 = vperm.slane %v1136, 0
    %v1257 = vmul.f32 %v1250, %v1255
    %v1258 = vmul.f32 %v1251, %v1255
    %v1259 = vmul.f32 %v1252, %v1255
    %v1260 = vmul.f32 %v1253, %v1255
    %v1261 = vpack.c.bf16 %v1258, %v1257
    %v1262 = vpack.c.bf16 %v1260, %v1259
    %v1279 = vunpack.c.l.b16 %v1112
    %v1280 = vunpack.c.l.b16 %v1113
    %v1281 = vunpack.c.l.b16 %v1114
    %v1282 = vunpack.c.l.b16 %v1115
    %v1283 = vunpack.c.l.b16 %v1116
    %v1284 = vunpack.c.l.b16 %v1117
    %v1285 = vunpack.c.l.b16 %v1118
    %v1286 = vunpack.c.l.b16 %v1119
    %v1287 = vunpack.c.l.b16 %v1120
    %v1288 = vunpack.c.l.b16 %v1121
    %v1289 = vunpack.c.l.b16 %v1122
    %v1290 = vunpack.c.l.b16 %v1123
    %v1291 = vunpack.c.l.b16 %v1124
    %v1292 = vunpack.c.l.b16 %v1125
    %v1293 = vunpack.c.l.b16 %v1126
    %v1294 = vunpack.c.l.b16 %v1127
    %v1295 = vpack.c.b16 %v1280, %v1279
    %v1296 = vpack.c.b16 %v1282, %v1281
    %v1297 = vpack.c.b16 %v1284, %v1283
    %v1298 = vpack.c.b16 %v1286, %v1285
    %v1299 = vpack.c.b16 %v1288, %v1287
    %v1300 = vpack.c.b16 %v1290, %v1289
    %v1301 = vpack.c.b16 %v1292, %v1291
    %v1302 = vpack.c.b16 %v1294, %v1293
    %1311 = vmatpush.bf16.msra.mxu0 %v1302
    %1312 = vmatpush.bf16.msra.mxu0 %v1301
    %1313 = vmatpush.bf16.msra.mxu0 %v1300
    %1314 = vmatpush.bf16.msra.mxu0 %v1299
    %1315 = vmatpush.bf16.msra.mxu0 %v1298
    %1316 = vmatpush.bf16.msra.mxu0 %v1297
    %1317 = vmatpush.bf16.msra.mxu0 %v1296
    %1318 = vmatpush.bf16.msra.mxu0 %v1295
    %1319 = vmatmul.bf16.gmra.mxu0 %v1261
    %v1320 = vpop.f32.mrf.mxu0
    %v1321 = vadd.f32 0.0, %v1320
    %v1322 = vpop.f32.mrf.mxu0
    %v1323 = vadd.f32 0.0, %v1322
    %1324 = vmatmul.bf16.gmra.mxu0 %v1262
    %v1325 = vpop.f32.mrf.mxu0
    %v1326 = vadd.f32 0.0, %v1325
    %v1327 = vpop.f32.mrf.mxu0
    %v1328 = vadd.f32 0.0, %v1327
    %1329 = vdwg.mxu0
    %v1330 = vmul.f32 %v1257, %v1128
    %v1331 = vmul.f32 %v1258, %v1129
    %v1332 = vmul.f32 %v1259, %v1130
    %v1333 = vmul.f32 %v1260, %v1131
    %v1334 = vmul.f32 %v1321, %v1132
    %v1335 = vmul.f32 %v1323, %v1133
    %v1336 = vmul.f32 %v1326, %v1134
    %v1337 = vmul.f32 %v1328, %v1135
    %v1338 = vadd.f32 %v1330, %v1334
    %v1339 = vadd.f32 %v1331, %v1335
    %v1340 = vadd.f32 %v1332, %v1336
    %v1341 = vadd.f32 %v1333, %v1337
    %v1342 = vpack.c.bf16 %v1339, %v1338
    %v1343 = vpack.c.bf16 %v1341, %v1340
    %v1344 = vld [vmem:[%s14] sm:$0x1]
    %v1345 = vmul.f32 %v992, %v992
    %v1346 = vmul.f32 %v994, %v994
    %v1347 = vmul.f32 %v997, %v997
    %v1348 = vmul.f32 %v999, %v999
    %v1349 = vpack.c.bf16 %v1346, %v1345
    %v1350 = vpack.c.bf16 %v1348, %v1347
    %1351 = vmatpush.bf16.msra.mxu0 %v1182
    %1352 = vmatpush.bf16.msra.mxu0 %v1181
    %1353 = vmatpush.bf16.msra.mxu0 %v1180
    %1354 = vmatpush.bf16.msra.mxu0 %v1179
    %1355 = vmatpush.bf16.msra.mxu0 %v1178
    %1356 = vmatpush.bf16.msra.mxu0 %v1177
    %1357 = vmatpush.bf16.msra.mxu0 %v1176
    %1358 = vmatpush.bf16.msra.mxu0 %v1175
    %1359 = vmatmul.bf16.gmra.mxu0 %v1349
    %v1360 = vpop.f32.mrf.mxu0
    %v1361 = vadd.f32 1e-06, %v1360
    %v1362 = vpop.f32.mrf.mxu0
    %v1363 = vadd.f32 1e-06, %v1362
    %1364 = vmatmul.bf16.gmra.mxu0 %v1350
    %v1365 = vpop.f32.mrf.mxu0
    %v1366 = vadd.f32 1e-06, %v1365
    %v1367 = vpop.f32.mrf.mxu0
    %v1368 = vadd.f32 1e-06, %v1367
    %1369 = vdwg.mxu0
    %v1370 = vrsqrt.pop %v1361
    %v1371 = vmul.f32 %v1370, %v1361
    %v1372 = vmul.f32 %v1371, %v1370
    %v1373 = vmul.f32 0.5, %v1372
    %v1374 = vsub.f32 1.5, %v1373
    %v1375 = vmul.f32 %v1370, %v1374
    %vm1376 = vweird.f32 %v1361
    %vm1377 = vweird.f32 %v1370
    %vm1378 = vmor %vm1376, %vm1377
    %v1379 = vsel %vm1378, %v1370, %v1375
    %v1380 = vrsqrt.pop %v1363
    %v1381 = vmul.f32 %v1380, %v1363
    %v1382 = vmul.f32 %v1381, %v1380
    %v1383 = vmul.f32 0.5, %v1382
    %v1384 = vsub.f32 1.5, %v1383
    %v1385 = vmul.f32 %v1380, %v1384
    %vm1386 = vweird.f32 %v1363
    %vm1387 = vweird.f32 %v1380
    %vm1388 = vmor %vm1386, %vm1387
    %v1389 = vsel %vm1388, %v1380, %v1385
    %v1390 = vrsqrt.pop %v1366
    %v1391 = vmul.f32 %v1390, %v1366
    %v1392 = vmul.f32 %v1391, %v1390
    %v1393 = vmul.f32 0.5, %v1392
    %v1394 = vsub.f32 1.5, %v1393
    %v1395 = vmul.f32 %v1390, %v1394
    %vm1396 = vweird.f32 %v1366
    %vm1397 = vweird.f32 %v1390
    %vm1398 = vmor %vm1396, %vm1397
    %v1399 = vsel %vm1398, %v1390, %v1395
    %v1400 = vrsqrt.pop %v1368
    %v1401 = vmul.f32 %v1400, %v1368
    %v1402 = vmul.f32 %v1401, %v1400
    %v1403 = vmul.f32 0.5, %v1402
    %v1404 = vsub.f32 1.5, %v1403
    %v1405 = vmul.f32 %v1400, %v1404
    %vm1406 = vweird.f32 %v1368
    %vm1407 = vweird.f32 %v1400
    %vm1408 = vmor %vm1406, %vm1407
    %v1409 = vsel %vm1408, %v1400, %v1405
    %v1410 = vmul.f32 %v992, %v1379
    %v1411 = vmul.f32 %v994, %v1389
    %v1412 = vmul.f32 %v997, %v1399
    %v1413 = vmul.f32 %v999, %v1409
    %v1415 = vperm.slane %v1344, 0
    %v1417 = vmul.f32 %v1410, %v1415
    %v1418 = vmul.f32 %v1411, %v1415
    %v1419 = vmul.f32 %v1412, %v1415
    %v1420 = vmul.f32 %v1413, %v1415
    %v1421 = vpack.c.bf16 %v1418, %v1417
    %v1422 = vpack.c.bf16 %v1420, %v1419
    %1423 = vmatpush.bf16.msra.mxu0 %v1302
    %1424 = vmatpush.bf16.msra.mxu0 %v1301
    %1425 = vmatpush.bf16.msra.mxu0 %v1300
    %1426 = vmatpush.bf16.msra.mxu0 %v1299
    %1427 = vmatpush.bf16.msra.mxu0 %v1298
    %1428 = vmatpush.bf16.msra.mxu0 %v1297
    %1429 = vmatpush.bf16.msra.mxu0 %v1296
    %1430 = vmatpush.bf16.msra.mxu0 %v1295
    %1431 = vmatmul.bf16.gmra.mxu0 %v1421
    %v1432 = vpop.f32.mrf.mxu0
    %v1433 = vadd.f32 0.0, %v1432
    %v1434 = vpop.f32.mrf.mxu0
    %v1435 = vadd.f32 0.0, %v1434
    %1436 = vmatmul.bf16.gmra.mxu0 %v1422
    %v1437 = vpop.f32.mrf.mxu0
    %v1438 = vadd.f32 0.0, %v1437
    %v1439 = vpop.f32.mrf.mxu0
    %v1440 = vadd.f32 0.0, %v1439
    %1441 = vdwg.mxu0
    %v1442 = vmul.f32 %v1417, %v1128
    %v1443 = vmul.f32 %v1418, %v1129
    %v1444 = vmul.f32 %v1419, %v1130
    %v1445 = vmul.f32 %v1420, %v1131
    %v1446 = vmul.f32 %v1433, %v1132
    %v1447 = vmul.f32 %v1435, %v1133
    %v1448 = vmul.f32 %v1438, %v1134
    %v1449 = vmul.f32 %v1440, %v1135
    %v1450 = vadd.f32 %v1442, %v1446
    %v1451 = vadd.f32 %v1443, %v1447
    %v1452 = vadd.f32 %v1444, %v1448
    %v1453 = vadd.f32 %v1445, %v1449
    %v1454 = vpack.c.bf16 %v1451, %v1450
    %v1455 = vpack.c.bf16 %v1453, %v1452
    %v1456 = vpack.c.bf16 %v1013, %v1011
    %v1457 = vpack.c.bf16 %v1018, %v1016
    %v1458 = vld [vmem:[%s6] sm:$0xf]
    %v1459 = vld [vmem:[%s6 + $0x4] sm:$0xf]
    %v1460 = vld [vmem:[%s6 + $0x8] sm:$0xf]
    %v1461 = vld [vmem:[%s6 + $0xc] sm:$0xf]
    %v1462 = vld [vmem:[%s6 + $0x10] sm:$0xf]
    %v1463 = vld [vmem:[%s6 + $0x14] sm:$0xf]
    %v1464 = vld [vmem:[%s6 + $0x18] sm:$0xf]
    %v1465 = vld [vmem:[%s6 + $0x1c] sm:$0xf]
    %v1466 = vld [vmem:[%s6 + $0x20] sm:$0xf]
    %v1467 = vld [vmem:[%s6 + $0x24] sm:$0xf]
    %v1468 = vld [vmem:[%s6 + $0x28] sm:$0xf]
    %v1469 = vld [vmem:[%s6 + $0x2c] sm:$0xf]
    %v1470 = vld [vmem:[%s6 + $0x30] sm:$0xf]
    %v1471 = vld [vmem:[%s6 + $0x34] sm:$0xf]
    %v1472 = vld [vmem:[%s6 + $0x38] sm:$0xf]
    %v1473 = vld [vmem:[%s6 + $0x3c] sm:$0xf]
    %v1474 = vld [vmem:[#allocation10] sm:$0xff]
    %v1475 = vld [vmem:[#allocation10 + $0x8] sm:$0xff]
    %v1476 = vld [vmem:[#allocation10 + $0x10] sm:$0xff]
    %v1477 = vld [vmem:[#allocation10 + $0x18] sm:$0xff]
    %v1478 = vld [vmem:[#allocation10 + $0x20] sm:$0xff]
    %v1479 = vld [vmem:[#allocation10 + $0x28] sm:$0xff]
    %v1480 = vld [vmem:[#allocation10 + $0x30] sm:$0xff]
    %v1481 = vld [vmem:[#allocation10 + $0x38] sm:$0xff]
    %v1482 = vld [vmem:[#allocation10 + $0x40] sm:$0xff]
    %v1483 = vld [vmem:[#allocation10 + $0x48] sm:$0xff]
    %v1484 = vld [vmem:[#allocation10 + $0x50] sm:$0xff]
    %v1485 = vld [vmem:[#allocation10 + $0x58] sm:$0xff]
    %v1486 = vld [vmem:[#allocation10 + $0x60] sm:$0xff]
    %v1487 = vld [vmem:[#allocation10 + $0x68] sm:$0xff]
    %v1488 = vld [vmem:[#allocation10 + $0x70] sm:$0xff]
    %v1489 = vld [vmem:[#allocation10 + $0x78] sm:$0xff]
    %v1506 = vunpack.c.l.b16 %v1458
    %v1507 = vunpack.c.l.b16 %v1459
    %v1508 = vunpack.c.l.b16 %v1460
    %v1509 = vunpack.c.l.b16 %v1461
    %v1510 = vunpack.c.l.b16 %v1462
    %v1511 = vunpack.c.l.b16 %v1463
    %v1512 = vunpack.c.l.b16 %v1464
    %v1513 = vunpack.c.l.b16 %v1465
    %v1514 = vunpack.c.l.b16 %v1466
    %v1515 = vunpack.c.l.b16 %v1467
    %v1516 = vunpack.c.l.b16 %v1468
    %v1517 = vunpack.c.l.b16 %v1469
    %v1518 = vunpack.c.l.b16 %v1470
    %v1519 = vunpack.c.l.b16 %v1471
    %v1520 = vunpack.c.l.b16 %v1472
    %v1521 = vunpack.c.l.b16 %v1473
    %v1522 = vpack.c.b16 %v1507, %v1506
    %v1523 = vpack.c.b16 %v1509, %v1508
    %v1524 = vpack.c.b16 %v1511, %v1510
    %v1525 = vpack.c.b16 %v1513, %v1512
    %v1526 = vpack.c.b16 %v1515, %v1514
    %v1527 = vpack.c.b16 %v1517, %v1516
    %v1528 = vpack.c.b16 %v1519, %v1518
    %v1529 = vpack.c.b16 %v1521, %v1520
    %vm1530 = vcmask 261120
    %v1532 = vsel %vm1530, %v1522, 0
    %v1535 = vsel %vm1530, %v1523, 0
    %v1538 = vsel %vm1530, %v1524, 0
    %v1541 = vsel %vm1530, %v1525, 0
    %v1544 = vsel %vm1530, %v1526, 0
    %v1547 = vsel %vm1530, %v1527, 0
    %v1550 = vsel %vm1530, %v1528, 0
    %v1553 = vsel %vm1530, %v1529, 0
    %1555 = vmatpush.bf16.msra.mxu0 0
    %1556 = vmatpush.bf16.msra.mxu0 0
    %1557 = vmatpush.bf16.msra.mxu0 0
    %1558 = vmatpush.bf16.msra.mxu0 0
    %1559 = vmatpush.bf16.msra.mxu0 0
    %1560 = vmatpush.bf16.msra.mxu0 0
    %1561 = vmatpush.bf16.msra.mxu0 %v1455
    %1562 = vmatpush.bf16.msra.mxu0 %v1454
    %1563 = vmatmul.bf16.gmra.mxu0 %v1532
    %v1564 = vpop.f32.mrf.mxu0
    %v1565 = vadd.f32 0.0, %v1564
    %v1566 = vpop.f32.mrf.mxu0
    %v1567 = vadd.f32 0.0, %v1566
    %1568 = vmatmul.bf16.gmra.mxu0 %v1535
    %v1569 = vpop.f32.mrf.mxu0
    %v1570 = vadd.f32 0.0, %v1569
    %v1571 = vpop.f32.mrf.mxu0
    %v1572 = vadd.f32 0.0, %v1571
    %1573 = vmatmul.bf16.gmra.mxu0 %v1538
    %v1574 = vpop.f32.mrf.mxu0
    %v1575 = vadd.f32 0.0, %v1574
    %v1576 = vpop.f32.mrf.mxu0
    %v1577 = vadd.f32 0.0, %v1576
    %1578 = vmatmul.bf16.gmra.mxu0 %v1541
    %v1579 = vpop.f32.mrf.mxu0
    %v1580 = vadd.f32 0.0, %v1579
    %v1581 = vpop.f32.mrf.mxu0
    %v1582 = vadd.f32 0.0, %v1581
    %1583 = vmatmul.bf16.gmra.mxu0 %v1544
    %v1584 = vpop.f32.mrf.mxu0
    %v1585 = vadd.f32 0.0, %v1584
    %v1586 = vpop.f32.mrf.mxu0
    %v1587 = vadd.f32 0.0, %v1586
    %1588 = vmatmul.bf16.gmra.mxu0 %v1547
    %v1589 = vpop.f32.mrf.mxu0
    %v1590 = vadd.f32 0.0, %v1589
    %v1591 = vpop.f32.mrf.mxu0
    %v1592 = vadd.f32 0.0, %v1591
    %1593 = vmatmul.bf16.gmra.mxu0 %v1550
    %v1594 = vpop.f32.mrf.mxu0
    %v1595 = vadd.f32 0.0, %v1594
    %v1596 = vpop.f32.mrf.mxu0
    %v1597 = vadd.f32 0.0, %v1596
    %1598 = vmatmul.bf16.gmra.mxu0 %v1553
    %v1599 = vpop.f32.mrf.mxu0
    %v1600 = vadd.f32 0.0, %v1599
    %v1601 = vpop.f32.mrf.mxu0
    %v1602 = vadd.f32 0.0, %v1601
    %1603 = vdwg.mxu0
    %v1604 = vmul.f32 %v1565, %v1474
    %v1605 = vmul.f32 %v1567, %v1475
    %v1606 = vmul.f32 %v1570, %v1476
    %v1607 = vmul.f32 %v1572, %v1477
    %v1608 = vmul.f32 %v1575, %v1478
    %v1609 = vmul.f32 %v1577, %v1479
    %v1610 = vmul.f32 %v1580, %v1480
    %v1611 = vmul.f32 %v1582, %v1481
    %v1612 = vmul.f32 %v1585, %v1482
    %v1613 = vmul.f32 %v1587, %v1483
    %v1614 = vmul.f32 %v1590, %v1484
    %v1615 = vmul.f32 %v1592, %v1485
    %v1616 = vmul.f32 %v1595, %v1486
    %v1617 = vmul.f32 %v1597, %v1487
    %v1618 = vmul.f32 %v1600, %v1488
    %v1619 = vmul.f32 %v1602, %v1489
    %v1620 = vpack.c.bf16 %v1605, %v1604
    %v1621 = vpack.c.bf16 %v1607, %v1606
    %v1622 = vpack.c.bf16 %v1609, %v1608
    %v1623 = vpack.c.bf16 %v1611, %v1610
    %v1624 = vpack.c.bf16 %v1613, %v1612
    %v1625 = vpack.c.bf16 %v1615, %v1614
    %v1626 = vpack.c.bf16 %v1617, %v1616
    %v1627 = vpack.c.bf16 %v1619, %v1618
    %1628 = vmatpush.bf16.msra.mxu0 0
    %1629 = vmatpush.bf16.msra.mxu0 0
    %1630 = vmatpush.bf16.msra.mxu0 0
    %1631 = vmatpush.bf16.msra.mxu0 0
    %1632 = vmatpush.bf16.msra.mxu0 0
    %1633 = vmatpush.bf16.msra.mxu0 0
    %1634 = vmatpush.bf16.msra.mxu0 %v1457
    %1635 = vmatpush.bf16.msra.mxu0 %v1456
    %1636 = vmatmul.bf16.gmra.mxu0 %v1532
    %v1637 = vpop.f32.mrf.mxu0
    %v1638 = vadd.f32 0.0, %v1637
    %v1639 = vpop.f32.mrf.mxu0
    %v1640 = vadd.f32 0.0, %v1639
    %1641 = vmatmul.bf16.gmra.mxu0 %v1535
    %v1642 = vpop.f32.mrf.mxu0
    %v1643 = vadd.f32 0.0, %v1642
    %v1644 = vpop.f32.mrf.mxu0
    %v1645 = vadd.f32 0.0, %v1644
    %1646 = vmatmul.bf16.gmra.mxu0 %v1538
    %v1647 = vpop.f32.mrf.mxu0
    %v1648 = vadd.f32 0.0, %v1647
    %v1649 = vpop.f32.mrf.mxu0
    %v1650 = vadd.f32 0.0, %v1649
    %1651 = vmatmul.bf16.gmra.mxu0 %v1541
    %v1652 = vpop.f32.mrf.mxu0
    %v1653 = vadd.f32 0.0, %v1652
    %v1654 = vpop.f32.mrf.mxu0
    %v1655 = vadd.f32 0.0, %v1654
    %1656 = vmatmul.bf16.gmra.mxu0 %v1544
    %v1657 = vpop.f32.mrf.mxu0
    %v1658 = vadd.f32 0.0, %v1657
    %v1659 = vpop.f32.mrf.mxu0
    %v1660 = vadd.f32 0.0, %v1659
    %1661 = vmatmul.bf16.gmra.mxu0 %v1547
    %v1662 = vpop.f32.mrf.mxu0
    %v1663 = vadd.f32 0.0, %v1662
    %v1664 = vpop.f32.mrf.mxu0
    %v1665 = vadd.f32 0.0, %v1664
    %1666 = vmatmul.bf16.gmra.mxu0 %v1550
    %v1667 = vpop.f32.mrf.mxu0
    %v1668 = vadd.f32 0.0, %v1667
    %v1669 = vpop.f32.mrf.mxu0
    %v1670 = vadd.f32 0.0, %v1669
    %1671 = vmatmul.bf16.gmra.mxu0 %v1553
    %v1672 = vpop.f32.mrf.mxu0
    %v1673 = vadd.f32 0.0, %v1672
    %v1674 = vpop.f32.mrf.mxu0
    %v1675 = vadd.f32 0.0, %v1674
    %1676 = vdwg.mxu0
    %v1677 = vmul.f32 %v1638, %v1474
    %v1678 = vmul.f32 %v1640, %v1475
    %v1679 = vmul.f32 %v1643, %v1476
    %v1680 = vmul.f32 %v1645, %v1477
    %v1681 = vmul.f32 %v1648, %v1478
    %v1682 = vmul.f32 %v1650, %v1479
    %v1683 = vmul.f32 %v1653, %v1480
    %v1684 = vmul.f32 %v1655, %v1481
    %v1685 = vmul.f32 %v1658, %v1482
    %v1686 = vmul.f32 %v1660, %v1483
    %v1687 = vmul.f32 %v1663, %v1484
    %v1688 = vmul.f32 %v1665, %v1485
    %v1689 = vmul.f32 %v1668, %v1486
    %v1690 = vmul.f32 %v1670, %v1487
    %v1691 = vmul.f32 %v1673, %v1488
    %v1692 = vmul.f32 %v1675, %v1489
    %v1693 = vpack.c.bf16 %v1678, %v1677
    %v1694 = vpack.c.bf16 %v1680, %v1679
    %v1695 = vpack.c.bf16 %v1682, %v1681
    %v1696 = vpack.c.bf16 %v1684, %v1683
    %v1697 = vpack.c.bf16 %v1686, %v1685
    %v1698 = vpack.c.bf16 %v1688, %v1687
    %v1699 = vpack.c.bf16 %v1690, %v1689
    %v1700 = vpack.c.bf16 %v1692, %v1691
    %v1701 = vld [vmem:[#allocation11] sm:$0xff]
    %v1702 = vld [vmem:[#allocation11 + $0x8] sm:$0xff]
    %v1703 = vld [vmem:[#allocation11 + $0x10] sm:$0xff]
    %v1704 = vld [vmem:[#allocation11 + $0x18] sm:$0xff]
    %1705 = vmatpush.bf16.xpose.msra.mxu0 %v1627
    %1706 = vmatpush.bf16.xpose.msra.mxu0 %v1626
    %1707 = vmatpush.bf16.xpose.msra.mxu0 %v1625
    %1708 = vmatpush.bf16.xpose.msra.mxu0 %v1624
    %1709 = vmatpush.bf16.xpose.msra.mxu0 %v1623
    %1710 = vmatpush.bf16.xpose.msra.mxu0 %v1622
    %1711 = vmatpush.bf16.xpose.msra.mxu0 %v1621
    %1712 = vmatpush.bf16.xpose.msra.mxu0 %v1620
    %1713 = vmatmul.bf16.gmra.mxu0 %v1342
    %v1714 = vpop.f32.mrf.mxu0
    %v1715 = vadd.f32 %v1701, %v1714
    %v1716 = vpop.f32.mrf.mxu0
    %v1717 = vadd.f32 %v1702, %v1716
    %1718 = vmatmul.bf16.gmra.mxu0 %v1343
    %v1719 = vpop.f32.mrf.mxu0
    %v1720 = vadd.f32 %v1703, %v1719
    %v1721 = vpop.f32.mrf.mxu0
    %v1722 = vadd.f32 %v1704, %v1721
    %1723 = vdwg.mxu0
    %1724 = vmax.xlane.f32.xlu0 %v1715
    %v1725 = vpop.xlane.xlu0 %1724
    %1726 = vmax.xlane.f32.xlu0 %v1717
    %v1727 = vpop.xlane.xlu0 %1726
    %1728 = vmax.xlane.f32.xlu0 %v1720
    %v1729 = vpop.xlane.xlu0 %1728
    %1730 = vmax.xlane.f32.xlu0 %v1722
    %v1731 = vpop.xlane.xlu0 %1730
    %v1732 = vsub.f32 %v1715, %v1725
    %v1733 = vsub.f32 %v1717, %v1727
    %v1734 = vsub.f32 %v1720, %v1729
    %v1735 = vsub.f32 %v1722, %v1731
    %v1736 = vmul.f32 %v1732, 1.442695
    %v1737 = vpow.pop %v1736
    %v1738 = vmul.f32 %v1733, 1.442695
    %v1739 = vpow.pop %v1738
    %v1740 = vmul.f32 %v1734, 1.442695
    %v1741 = vpow.pop %v1740
    %v1742 = vmul.f32 %v1735, 1.442695
    %v1743 = vpow.pop %v1742
    %v1744 = vpack.c.bf16 %v1739, %v1737
    %v1745 = vpack.c.bf16 %v1743, %v1741
    %1746 = vmatpush.bf16.msra.mxu0 %v1700
    %1747 = vmatpush.bf16.msra.mxu0 %v1699
    %1748 = vmatpush.bf16.msra.mxu0 %v1698
    %1749 = vmatpush.bf16.msra.mxu0 %v1697
    %1750 = vmatpush.bf16.msra.mxu0 %v1696
    %1751 = vmatpush.bf16.msra.mxu0 %v1695
    %1752 = vmatpush.bf16.msra.mxu0 %v1694
    %1753 = vmatpush.bf16.msra.mxu0 %v1693
    %1754 = vmatmul.bf16.gmra.mxu0 %v1744
    %v1755 = vpop.f32.mrf.mxu0
    %v1756 = vadd.f32 0.0, %v1755
    %v1757 = vpop.f32.mrf.mxu0
    %v1758 = vadd.f32 0.0, %v1757
    %1759 = vmatmul.bf16.gmra.mxu0 %v1745
    %v1760 = vpop.f32.mrf.mxu0
    %v1761 = vadd.f32 0.0, %v1760
    %v1762 = vpop.f32.mrf.mxu0
    %v1763 = vadd.f32 0.0, %v1762
    %1764 = vdwg.mxu0
    %v1765 = vpack.c.bf16 %v1475, %v1474
    %v1766 = vpack.c.bf16 %v1477, %v1476
    %v1767 = vpack.c.bf16 %v1479, %v1478
    %v1768 = vpack.c.bf16 %v1481, %v1480
    %v1769 = vpack.c.bf16 %v1483, %v1482
    %v1770 = vpack.c.bf16 %v1485, %v1484
    %v1771 = vpack.c.bf16 %v1487, %v1486
    %v1772 = vpack.c.bf16 %v1489, %v1488
    %1773 = vmatpush.bf16.msra.mxu0 %v1772
    %1774 = vmatpush.bf16.msra.mxu0 %v1771
    %1775 = vmatpush.bf16.msra.mxu0 %v1770
    %1776 = vmatpush.bf16.msra.mxu0 %v1769
    %1777 = vmatpush.bf16.msra.mxu0 %v1768
    %1778 = vmatpush.bf16.msra.mxu0 %v1767
    %1779 = vmatpush.bf16.msra.mxu0 %v1766
    %1780 = vmatpush.bf16.msra.mxu0 %v1765
    %1781 = vmatmul.bf16.gmra.mxu0 %v1744
    %v1782 = vpop.f32.mrf.mxu0
    %v1783 = vadd.f32 0.0, %v1782
    %v1784 = vpop.f32.mrf.mxu0
    %v1785 = vadd.f32 0.0, %v1784
    %1786 = vmatmul.bf16.gmra.mxu0 %v1745
    %v1787 = vpop.f32.mrf.mxu0
    %v1788 = vadd.f32 0.0, %v1787
    %v1789 = vpop.f32.mrf.mxu0
    %v1790 = vadd.f32 0.0, %v1789
    %1791 = vdwg.mxu0
    %v1792 = vrcp.pop %v1783
    %v1793 = vrcp.pop %v1785
    %v1794 = vrcp.pop %v1788
    %v1795 = vrcp.pop %v1790
    %v1796 = vmul.f32 %v1756, %v1792
    %v1797 = vmul.f32 %v1758, %v1793
    %v1798 = vmul.f32 %v1761, %v1794
    %v1799 = vmul.f32 %v1763, %v1795
    %v1800 = vpack.c.bf16 %v1797, %v1796
    %v1801 = vpack.c.bf16 %v1799, %v1798
    %v1802 = vld [vmem:[#allocation16] sm:$0xf]
    %v1803 = vld [vmem:[#allocation16 + $0x4] sm:$0xf]
    %v1804 = vld [vmem:[#allocation16 + $0x8] sm:$0xf]
    %v1805 = vld [vmem:[#allocation16 + $0xc] sm:$0xf]
    %v1806 = vld [vmem:[#allocation16 + $0x10] sm:$0xf]
    %v1807 = vld [vmem:[#allocation16 + $0x14] sm:$0xf]
    %v1808 = vld [vmem:[#allocation16 + $0x18] sm:$0xf]
    %v1809 = vld [vmem:[#allocation16 + $0x1c] sm:$0xf]
    %v1810 = vld [vmem:[#allocation16 + $0x20] sm:$0xf]
    %v1811 = vld [vmem:[#allocation16 + $0x24] sm:$0xf]
    %v1812 = vld [vmem:[#allocation16 + $0x28] sm:$0xf]
    %v1813 = vld [vmem:[#allocation16 + $0x2c] sm:$0xf]
    %v1814 = vld [vmem:[#allocation16 + $0x30] sm:$0xf]
    %v1815 = vld [vmem:[#allocation16 + $0x34] sm:$0xf]
    %v1816 = vld [vmem:[#allocation16 + $0x38] sm:$0xf]
    %v1817 = vld [vmem:[#allocation16 + $0x3c] sm:$0xf]
    %v1818 = vmul.f32 %v1030, %v1030
    %v1819 = vmul.f32 %v1049, %v1049
    %v1820 = vmul.f32 %v1068, %v1068
    %v1821 = vmul.f32 %v1087, %v1087
    %v1822 = vmul.f32 %v1032, %v1032
    %v1823 = vmul.f32 %v1051, %v1051
    %v1824 = vmul.f32 %v1070, %v1070
    %v1825 = vmul.f32 %v1089, %v1089
    %v1826 = vmul.f32 %v1035, %v1035
    %v1827 = vmul.f32 %v1054, %v1054
    %v1828 = vmul.f32 %v1073, %v1073
    %v1829 = vmul.f32 %v1092, %v1092
    %v1830 = vmul.f32 %v1037, %v1037
    %v1831 = vmul.f32 %v1056, %v1056
    %v1832 = vmul.f32 %v1075, %v1075
    %v1833 = vmul.f32 %v1094, %v1094
    %v1834 = vmul.f32 %v1030, %v1818
    %v1835 = vmul.f32 %v1049, %v1819
    %v1836 = vmul.f32 %v1068, %v1820
    %v1837 = vmul.f32 %v1087, %v1821
    %v1838 = vmul.f32 %v1032, %v1822
    %v1839 = vmul.f32 %v1051, %v1823
    %v1840 = vmul.f32 %v1070, %v1824
    %v1841 = vmul.f32 %v1089, %v1825
    %v1842 = vmul.f32 %v1035, %v1826
    %v1843 = vmul.f32 %v1054, %v1827
    %v1844 = vmul.f32 %v1073, %v1828
    %v1845 = vmul.f32 %v1092, %v1829
    %v1846 = vmul.f32 %v1037, %v1830
    %v1847 = vmul.f32 %v1056, %v1831
    %v1848 = vmul.f32 %v1075, %v1832
    %v1849 = vmul.f32 %v1094, %v1833
    %v1850 = vmul.f32 %v1834, 0.044715
    %v1851 = vmul.f32 %v1835, 0.044715
    %v1852 = vmul.f32 %v1836, 0.044715
    %v1853 = vmul.f32 %v1837, 0.044715
    %v1854 = vmul.f32 %v1838, 0.044715
    %v1855 = vmul.f32 %v1839, 0.044715
    %v1856 = vmul.f32 %v1840, 0.044715
    %v1857 = vmul.f32 %v1841, 0.044715
    %v1858 = vmul.f32 %v1842, 0.044715
    %v1859 = vmul.f32 %v1843, 0.044715
    %v1860 = vmul.f32 %v1844, 0.044715
    %v1861 = vmul.f32 %v1845, 0.044715
    %v1862 = vmul.f32 %v1846, 0.044715
    %v1863 = vmul.f32 %v1847, 0.044715
    %v1864 = vmul.f32 %v1848, 0.044715
    %v1865 = vmul.f32 %v1849, 0.044715
    %v1866 = vadd.f32 %v1030, %v1850
    %v1867 = vadd.f32 %v1049, %v1851
    %v1868 = vadd.f32 %v1068, %v1852
    %v1869 = vadd.f32 %v1087, %v1853
    %v1870 = vadd.f32 %v1032, %v1854
    %v1871 = vadd.f32 %v1051, %v1855
    %v1872 = vadd.f32 %v1070, %v1856
    %v1873 = vadd.f32 %v1089, %v1857
    %v1874 = vadd.f32 %v1035, %v1858
    %v1875 = vadd.f32 %v1054, %v1859
    %v1876 = vadd.f32 %v1073, %v1860
    %v1877 = vadd.f32 %v1092, %v1861
    %v1878 = vadd.f32 %v1037, %v1862
    %v1879 = vadd.f32 %v1056, %v1863
    %v1880 = vadd.f32 %v1075, %v1864
    %v1881 = vadd.f32 %v1094, %v1865
    %v1882 = vmul.f32 %v1866, 0.7978846
    %v1883 = vmul.f32 %v1867, 0.7978846
    %v1884 = vmul.f32 %v1868, 0.7978846
    %v1885 = vmul.f32 %v1869, 0.7978846
    %v1886 = vmul.f32 %v1870, 0.7978846
    %v1887 = vmul.f32 %v1871, 0.7978846
    %v1888 = vmul.f32 %v1872, 0.7978846
    %v1889 = vmul.f32 %v1873, 0.7978846
    %v1890 = vmul.f32 %v1874, 0.7978846
    %v1891 = vmul.f32 %v1875, 0.7978846
    %v1892 = vmul.f32 %v1876, 0.7978846
    %v1893 = vmul.f32 %v1877, 0.7978846
    %v1894 = vmul.f32 %v1878, 0.7978846
    %v1895 = vmul.f32 %v1879, 0.7978846
    %v1896 = vmul.f32 %v1880, 0.7978846
    %v1897 = vmul.f32 %v1881, 0.7978846
    %v1898 = vtanh.pop %v1882
    %v1899 = vtanh.pop %v1883
    %v1900 = vtanh.pop %v1884
    %v1901 = vtanh.pop %v1885
    %v1902 = vtanh.pop %v1886
    %v1903 = vtanh.pop %v1887
    %v1904 = vtanh.pop %v1888
    %v1905 = vtanh.pop %v1889
    %v1906 = vtanh.pop %v1890
    %v1907 = vtanh.pop %v1891
    %v1908 = vtanh.pop %v1892
    %v1909 = vtanh.pop %v1893
    %v1910 = vtanh.pop %v1894
    %v1911 = vtanh.pop %v1895
    %v1912 = vtanh.pop %v1896
    %v1913 = vtanh.pop %v1897
    %v1914 = vadd.f32 %v1898, 1.0
    %v1915 = vadd.f32 %v1899, 1.0
    %v1916 = vadd.f32 %v1900, 1.0
    %v1917 = vadd.f32 %v1901, 1.0
    %v1918 = vadd.f32 %v1902, 1.0
    %v1919 = vadd.f32 %v1903, 1.0
    %v1920 = vadd.f32 %v1904, 1.0
    %v1921 = vadd.f32 %v1905, 1.0
    %v1922 = vadd.f32 %v1906, 1.0
    %v1923 = vadd.f32 %v1907, 1.0
    %v1924 = vadd.f32 %v1908, 1.0
    %v1925 = vadd.f32 %v1909, 1.0
    %v1926 = vadd.f32 %v1910, 1.0
    %v1927 = vadd.f32 %v1911, 1.0
    %v1928 = vadd.f32 %v1912, 1.0
    %v1929 = vadd.f32 %v1913, 1.0
    %v1930 = vmul.f32 %v1914, 0.5
    %v1931 = vmul.f32 %v1915, 0.5
    %v1932 = vmul.f32 %v1916, 0.5
    %v1933 = vmul.f32 %v1917, 0.5
    %v1934 = vmul.f32 %v1918, 0.5
    %v1935 = vmul.f32 %v1919, 0.5
    %v1936 = vmul.f32 %v1920, 0.5
    %v1937 = vmul.f32 %v1921, 0.5
    %v1938 = vmul.f32 %v1922, 0.5
    %v1939 = vmul.f32 %v1923, 0.5
    %v1940 = vmul.f32 %v1924, 0.5
    %v1941 = vmul.f32 %v1925, 0.5
    %v1942 = vmul.f32 %v1926, 0.5
    %v1943 = vmul.f32 %v1927, 0.5
    %v1944 = vmul.f32 %v1928, 0.5
    %v1945 = vmul.f32 %v1929, 0.5
    %v1946 = vmul.f32 %v1030, %v1930
    %v1947 = vmul.f32 %v1049, %v1931
    %v1948 = vmul.f32 %v1068, %v1932
    %v1949 = vmul.f32 %v1087, %v1933
    %v1950 = vmul.f32 %v1032, %v1934
    %v1951 = vmul.f32 %v1051, %v1935
    %v1952 = vmul.f32 %v1070, %v1936
    %v1953 = vmul.f32 %v1089, %v1937
    %v1954 = vmul.f32 %v1035, %v1938
    %v1955 = vmul.f32 %v1054, %v1939
    %v1956 = vmul.f32 %v1073, %v1940
    %v1957 = vmul.f32 %v1092, %v1941
    %v1958 = vmul.f32 %v1037, %v1942
    %v1959 = vmul.f32 %v1056, %v1943
    %v1960 = vmul.f32 %v1075, %v1944
    %v1961 = vmul.f32 %v1094, %v1945
    %v1962 = vpack.c.bf16 %v1950, %v1946
    %v1963 = vpack.c.bf16 %v1951, %v1947
    %v1964 = vpack.c.bf16 %v1952, %v1948
    %v1965 = vpack.c.bf16 %v1953, %v1949
    %v1966 = vpack.c.bf16 %v1958, %v1954
    %v1967 = vpack.c.bf16 %v1959, %v1955
    %v1968 = vpack.c.bf16 %v1960, %v1956
    %v1969 = vpack.c.bf16 %v1961, %v1957
    %v1970 = vld [vmem:[#allocation17] sm:$0xf]
    %v1971 = vld [vmem:[#allocation17 + $0x4] sm:$0xf]
    %v1972 = vld [vmem:[#allocation17 + $0x8] sm:$0xf]
    %v1973 = vld [vmem:[#allocation17 + $0xc] sm:$0xf]
    %v1974 = vld [vmem:[#allocation17 + $0x10] sm:$0xf]
    %v1975 = vld [vmem:[#allocation17 + $0x14] sm:$0xf]
    %v1976 = vld [vmem:[#allocation17 + $0x18] sm:$0xf]
    %v1977 = vld [vmem:[#allocation17 + $0x1c] sm:$0xf]
    %v1978 = vld [vmem:[#allocation17 + $0x20] sm:$0xf]
    %v1979 = vld [vmem:[#allocation17 + $0x24] sm:$0xf]
    %v1980 = vld [vmem:[#allocation17 + $0x28] sm:$0xf]
    %v1981 = vld [vmem:[#allocation17 + $0x2c] sm:$0xf]
    %v1982 = vld [vmem:[#allocation17 + $0x30] sm:$0xf]
    %v1983 = vld [vmem:[#allocation17 + $0x34] sm:$0xf]
    %v1984 = vld [vmem:[#allocation17 + $0x38] sm:$0xf]
    %v1985 = vld [vmem:[#allocation17 + $0x3c] sm:$0xf]
    %v1986 = vld [vmem:[#allocation17 + $0x40] sm:$0xf]
    %v1987 = vld [vmem:[#allocation17 + $0x44] sm:$0xf]
    %v1988 = vld [vmem:[#allocation17 + $0x48] sm:$0xf]
    %v1989 = vld [vmem:[#allocation17 + $0x4c] sm:$0xf]
    %v1990 = vld [vmem:[#allocation17 + $0x50] sm:$0xf]
    %v1991 = vld [vmem:[#allocation17 + $0x54] sm:$0xf]
    %v1992 = vld [vmem:[#allocation17 + $0x58] sm:$0xf]
    %v1993 = vld [vmem:[#allocation17 + $0x5c] sm:$0xf]
    %v1994 = vld [vmem:[#allocation17 + $0x60] sm:$0xf]
    %v1995 = vld [vmem:[#allocation17 + $0x64] sm:$0xf]
    %v1996 = vld [vmem:[#allocation17 + $0x68] sm:$0xf]
    %v1997 = vld [vmem:[#allocation17 + $0x6c] sm:$0xf]
    %v1998 = vld [vmem:[#allocation17 + $0x70] sm:$0xf]
    %v1999 = vld [vmem:[#allocation17 + $0x74] sm:$0xf]
    %v2000 = vld [vmem:[#allocation17 + $0x78] sm:$0xf]
    %v2001 = vld [vmem:[#allocation17 + $0x7c] sm:$0xf]
    %v2002 = vld [vmem:[#allocation17 + $0x80] sm:$0xf]
    %v2003 = vld [vmem:[#allocation17 + $0x84] sm:$0xf]
    %v2004 = vld [vmem:[#allocation17 + $0x88] sm:$0xf]
    %v2005 = vld [vmem:[#allocation17 + $0x8c] sm:$0xf]
    %v2006 = vld [vmem:[#allocation17 + $0x90] sm:$0xf]
    %v2007 = vld [vmem:[#allocation17 + $0x94] sm:$0xf]
    %v2008 = vld [vmem:[#allocation17 + $0x98] sm:$0xf]
    %v2009 = vld [vmem:[#allocation17 + $0x9c] sm:$0xf]
    %v2010 = vld [vmem:[#allocation17 + $0xa0] sm:$0xf]
    %v2011 = vld [vmem:[#allocation17 + $0xa4] sm:$0xf]
    %v2012 = vld [vmem:[#allocation17 + $0xa8] sm:$0xf]
    %v2013 = vld [vmem:[#allocation17 + $0xac] sm:$0xf]
    %v2014 = vld [vmem:[#allocation17 + $0xb0] sm:$0xf]
    %v2015 = vld [vmem:[#allocation17 + $0xb4] sm:$0xf]
    %v2016 = vld [vmem:[#allocation17 + $0xb8] sm:$0xf]
    %v2017 = vld [vmem:[#allocation17 + $0xbc] sm:$0xf]
    %v2018 = vld [vmem:[#allocation17 + $0xc0] sm:$0xf]
    %v2019 = vld [vmem:[#allocation17 + $0xc4] sm:$0xf]
    %v2020 = vld [vmem:[#allocation17 + $0xc8] sm:$0xf]
    %v2021 = vld [vmem:[#allocation17 + $0xcc] sm:$0xf]
    %v2022 = vld [vmem:[#allocation17 + $0xd0] sm:$0xf]
    %v2023 = vld [vmem:[#allocation17 + $0xd4] sm:$0xf]
    %v2024 = vld [vmem:[#allocation17 + $0xd8] sm:$0xf]
    %v2025 = vld [vmem:[#allocation17 + $0xdc] sm:$0xf]
    %v2026 = vld [vmem:[#allocation17 + $0xe0] sm:$0xf]
    %v2027 = vld [vmem:[#allocation17 + $0xe4] sm:$0xf]
    %v2028 = vld [vmem:[#allocation17 + $0xe8] sm:$0xf]
    %v2029 = vld [vmem:[#allocation17 + $0xec] sm:$0xf]
    %v2030 = vld [vmem:[#allocation17 + $0xf0] sm:$0xf]
    %v2031 = vld [vmem:[#allocation17 + $0xf4] sm:$0xf]
    %v2032 = vld [vmem:[#allocation17 + $0xf8] sm:$0xf]
    %v2033 = vld [vmem:[#allocation17 + $0xfc] sm:$0xf]
    %v2098 = vunpack.c.l.b16 %v1970
    %v2099 = vunpack.c.l.b16 %v1971
    %v2100 = vunpack.c.l.b16 %v1972
    %v2101 = vunpack.c.l.b16 %v1973
    %v2102 = vunpack.c.l.b16 %v1974
    %v2103 = vunpack.c.l.b16 %v1975
    %v2104 = vunpack.c.l.b16 %v1976
    %v2105 = vunpack.c.l.b16 %v1977
    %v2106 = vunpack.c.l.b16 %v1978
    %v2107 = vunpack.c.l.b16 %v1979
    %v2108 = vunpack.c.l.b16 %v1980
    %v2109 = vunpack.c.l.b16 %v1981
    %v2110 = vunpack.c.l.b16 %v1982
    %v2111 = vunpack.c.l.b16 %v1983
    %v2112 = vunpack.c.l.b16 %v1984
    %v2113 = vunpack.c.l.b16 %v1985
    %v2114 = vunpack.c.l.b16 %v1986
    %v2115 = vunpack.c.l.b16 %v1987
    %v2116 = vunpack.c.l.b16 %v1988
    %v2117 = vunpack.c.l.b16 %v1989
    %v2118 = vunpack.c.l.b16 %v1990
    %v2119 = vunpack.c.l.b16 %v1991
    %v2120 = vunpack.c.l.b16 %v1992
    %v2121 = vunpack.c.l.b16 %v1993
    %v2122 = vunpack.c.l.b16 %v1994
    %v2123 = vunpack.c.l.b16 %v1995
    %v2124 = vunpack.c.l.b16 %v1996
    %v2125 = vunpack.c.l.b16 %v1997
    %v2126 = vunpack.c.l.b16 %v1998
    %v2127 = vunpack.c.l.b16 %v1999
    %v2128 = vunpack.c.l.b16 %v2000
    %v2129 = vunpack.c.l.b16 %v2001
    %v2130 = vunpack.c.l.b16 %v2002
    %v2131 = vunpack.c.l.b16 %v2003
    %v2132 = vunpack.c.l.b16 %v2004
    %v2133 = vunpack.c.l.b16 %v2005
    %v2134 = vunpack.c.l.b16 %v2006
    %v2135 = vunpack.c.l.b16 %v2007
    %v2136 = vunpack.c.l.b16 %v2008
    %v2137 = vunpack.c.l.b16 %v2009
    %v2138 = vunpack.c.l.b16 %v2010
    %v2139 = vunpack.c.l.b16 %v2011
    %v2140 = vunpack.c.l.b16 %v2012
    %v2141 = vunpack.c.l.b16 %v2013
    %v2142 = vunpack.c.l.b16 %v2014
    %v2143 = vunpack.c.l.b16 %v2015
    %v2144 = vunpack.c.l.b16 %v2016
    %v2145 = vunpack.c.l.b16 %v2017
    %v2146 = vunpack.c.l.b16 %v2018
    %v2147 = vunpack.c.l.b16 %v2019
    %v2148 = vunpack.c.l.b16 %v2020
    %v2149 = vunpack.c.l.b16 %v2021
    %v2150 = vunpack.c.l.b16 %v2022
    %v2151 = vunpack.c.l.b16 %v2023
    %v2152 = vunpack.c.l.b16 %v2024
    %v2153 = vunpack.c.l.b16 %v2025
    %v2154 = vunpack.c.l.b16 %v2026
    %v2155 = vunpack.c.l.b16 %v2027
    %v2156 = vunpack.c.l.b16 %v2028
    %v2157 = vunpack.c.l.b16 %v2029
    %v2158 = vunpack.c.l.b16 %v2030
    %v2159 = vunpack.c.l.b16 %v2031
    %v2160 = vunpack.c.l.b16 %v2032
    %v2161 = vunpack.c.l.b16 %v2033
    %v2162 = vpack.c.b16 %v2099, %v2098
    %v2163 = vpack.c.b16 %v2101, %v2100
    %v2164 = vpack.c.b16 %v2103, %v2102
    %v2165 = vpack.c.b16 %v2105, %v2104
    %v2166 = vpack.c.b16 %v2107, %v2106
    %v2167 = vpack.c.b16 %v2109, %v2108
    %v2168 = vpack.c.b16 %v2111, %v2110
    %v2169 = vpack.c.b16 %v2113, %v2112
    %v2170 = vpack.c.b16 %v2115, %v2114
    %v2171 = vpack.c.b16 %v2117, %v2116
    %v2172 = vpack.c.b16 %v2119, %v2118
    %v2173 = vpack.c.b16 %v2121, %v2120
    %v2174 = vpack.c.b16 %v2123, %v2122
    %v2175 = vpack.c.b16 %v2125, %v2124
    %v2176 = vpack.c.b16 %v2127, %v2126
    %v2177 = vpack.c.b16 %v2129, %v2128
    %v2178 = vpack.c.b16 %v2131, %v2130
    %v2179 = vpack.c.b16 %v2133, %v2132
    %v2180 = vpack.c.b16 %v2135, %v2134
    %v2181 = vpack.c.b16 %v2137, %v2136
    %v2182 = vpack.c.b16 %v2139, %v2138
    %v2183 = vpack.c.b16 %v2141, %v2140
    %v2184 = vpack.c.b16 %v2143, %v2142
    %v2185 = vpack.c.b16 %v2145, %v2144
    %v2186 = vpack.c.b16 %v2147, %v2146
    %v2187 = vpack.c.b16 %v2149, %v2148
    %v2188 = vpack.c.b16 %v2151, %v2150
    %v2189 = vpack.c.b16 %v2153, %v2152
    %v2190 = vpack.c.b16 %v2155, %v2154
    %v2191 = vpack.c.b16 %v2157, %v2156
    %v2192 = vpack.c.b16 %v2159, %v2158
    %v2193 = vpack.c.b16 %v2161, %v2160
    %2226 = vmatpush.bf16.msra.mxu0 %v2169
    %2227 = vmatpush.bf16.msra.mxu0 %v2168
    %2228 = vmatpush.bf16.msra.mxu0 %v2167
    %2229 = vmatpush.bf16.msra.mxu0 %v2166
    %2230 = vmatpush.bf16.msra.mxu0 %v2165
    %2231 = vmatpush.bf16.msra.mxu0 %v2164
    %2232 = vmatpush.bf16.msra.mxu0 %v2163
    %2233 = vmatpush.bf16.msra.mxu0 %v2162
    %2234 = vmatmul.bf16.gmra.mxu0 %v1962
    %v2235 = vpop.f32.mrf.mxu0
    %v2236 = vadd.f32 0.0, %v2235
    %v2237 = vpop.f32.mrf.mxu0
    %v2238 = vadd.f32 0.0, %v2237
    %2239 = vmatmul.bf16.gmra.mxu0 %v1966
    %v2240 = vpop.f32.mrf.mxu0
    %v2241 = vadd.f32 0.0, %v2240
    %v2242 = vpop.f32.mrf.mxu0
    %v2243 = vadd.f32 0.0, %v2242
    %2244 = vdwg.mxu0
    %2245 = vmatpush.bf16.msra.mxu0 %v2177
    %2246 = vmatpush.bf16.msra.mxu0 %v2176
    %2247 = vmatpush.bf16.msra.mxu0 %v2175
    %2248 = vmatpush.bf16.msra.mxu0 %v2174
    %2249 = vmatpush.bf16.msra.mxu0 %v2173
    %2250 = vmatpush.bf16.msra.mxu0 %v2172
    %2251 = vmatpush.bf16.msra.mxu0 %v2171
    %2252 = vmatpush.bf16.msra.mxu0 %v2170
    %2253 = vmatmul.bf16.gmra.mxu0 %v1963
    %v2254 = vpop.f32.mrf.mxu0
    %v2255 = vadd.f32 %v2236, %v2254
    %v2256 = vpop.f32.mrf.mxu0
    %v2257 = vadd.f32 %v2238, %v2256
    %2258 = vmatmul.bf16.gmra.mxu0 %v1967
    %v2259 = vpop.f32.mrf.mxu0
    %v2260 = vadd.f32 %v2241, %v2259
    %v2261 = vpop.f32.mrf.mxu0
    %v2262 = vadd.f32 %v2243, %v2261
    %2263 = vdwg.mxu0
    %2264 = vmatpush.bf16.msra.mxu0 %v2185
    %2265 = vmatpush.bf16.msra.mxu0 %v2184
    %2266 = vmatpush.bf16.msra.mxu0 %v2183
    %2267 = vmatpush.bf16.msra.mxu0 %v2182
    %2268 = vmatpush.bf16.msra.mxu0 %v2181
    %2269 = vmatpush.bf16.msra.mxu0 %v2180
    %2270 = vmatpush.bf16.msra.mxu0 %v2179
    %2271 = vmatpush.bf16.msra.mxu0 %v2178
    %2272 = vmatmul.bf16.gmra.mxu0 %v1964
    %v2273 = vpop.f32.mrf.mxu0
    %v2274 = vadd.f32 %v2255, %v2273
    %v2275 = vpop.f32.mrf.mxu0
    %v2276 = vadd.f32 %v2257, %v2275
    %2277 = vmatmul.bf16.gmra.mxu0 %v1968
    %v2278 = vpop.f32.mrf.mxu0
    %v2279 = vadd.f32 %v2260, %v2278
    %v2280 = vpop.f32.mrf.mxu0
    %v2281 = vadd.f32 %v2262, %v2280
    %2282 = vdwg.mxu0
    %2283 = vmatpush.bf16.msra.mxu0 %v2193
    %2284 = vmatpush.bf16.msra.mxu0 %v2192
    %2285 = vmatpush.bf16.msra.mxu0 %v2191
    %2286 = vmatpush.bf16.msra.mxu0 %v2190
    %2287 = vmatpush.bf16.msra.mxu0 %v2189
    %2288 = vmatpush.bf16.msra.mxu0 %v2188
    %2289 = vmatpush.bf16.msra.mxu0 %v2187
    %2290 = vmatpush.bf16.msra.mxu0 %v2186
    %2291 = vmatmul.bf16.gmra.mxu0 %v1965
    %v2292 = vpop.f32.mrf.mxu0
    %v2293 = vadd.f32 %v2274, %v2292
    %v2294 = vpop.f32.mrf.mxu0
    %v2295 = vadd.f32 %v2276, %v2294
    %2296 = vmatmul.bf16.gmra.mxu0 %v1969
    %v2297 = vpop.f32.mrf.mxu0
    %v2298 = vadd.f32 %v2279, %v2297
    %v2299 = vpop.f32.mrf.mxu0
    %v2300 = vadd.f32 %v2281, %v2299
    %2301 = vdwg.mxu0
    %v2318 = vunpack.c.l.b16 %v1802
    %v2319 = vunpack.c.l.b16 %v1803
    %v2320 = vunpack.c.l.b16 %v1804
    %v2321 = vunpack.c.l.b16 %v1805
    %v2322 = vunpack.c.l.b16 %v1806
    %v2323 = vunpack.c.l.b16 %v1807
    %v2324 = vunpack.c.l.b16 %v1808
    %v2325 = vunpack.c.l.b16 %v1809
    %v2326 = vunpack.c.l.b16 %v1810
    %v2327 = vunpack.c.l.b16 %v1811
    %v2328 = vunpack.c.l.b16 %v1812
    %v2329 = vunpack.c.l.b16 %v1813
    %v2330 = vunpack.c.l.b16 %v1814
    %v2331 = vunpack.c.l.b16 %v1815
    %v2332 = vunpack.c.l.b16 %v1816
    %v2333 = vunpack.c.l.b16 %v1817
    %v2334 = vpack.c.b16 %v2319, %v2318
    %v2335 = vpack.c.b16 %v2321, %v2320
    %v2336 = vpack.c.b16 %v2323, %v2322
    %v2337 = vpack.c.b16 %v2325, %v2324
    %v2338 = vpack.c.b16 %v2327, %v2326
    %v2339 = vpack.c.b16 %v2329, %v2328
    %v2340 = vpack.c.b16 %v2331, %v2330
    %v2341 = vpack.c.b16 %v2333, %v2332
    %2350 = vmatpush.bf16.msra.mxu0 %v2341
    %2351 = vmatpush.bf16.msra.mxu0 %v2340
    %2352 = vmatpush.bf16.msra.mxu0 %v2339
    %2353 = vmatpush.bf16.msra.mxu0 %v2338
    %2354 = vmatpush.bf16.msra.mxu0 %v2337
    %2355 = vmatpush.bf16.msra.mxu0 %v2336
    %2356 = vmatpush.bf16.msra.mxu0 %v2335
    %2357 = vmatpush.bf16.msra.mxu0 %v2334
    %2358 = vmatmul.bf16.gmra.mxu0 %v1800
    %v2359 = vpop.f32.mrf.mxu0
    %v2360 = vadd.f32 %v2293, %v2359
    %v2361 = vpop.f32.mrf.mxu0
    %v2362 = vadd.f32 %v2295, %v2361
    %2363 = vmatmul.bf16.gmra.mxu0 %v1801
    %v2364 = vpop.f32.mrf.mxu0
    %v2365 = vadd.f32 %v2298, %v2364
    %v2366 = vpop.f32.mrf.mxu0
    %v2367 = vadd.f32 %v2300, %v2366
    %2368 = vdwg.mxu0
    %v2369 = vld [vmem:[%s17] sm:$0x1]
    %v2371 = vperm.slane %v2369, 0
    %v2373 = vadd.f32 %v2360, %v2371
    %v2374 = vadd.f32 %v2362, %v2371
    %v2375 = vadd.f32 %v2365, %v2371
    %v2376 = vadd.f32 %v2367, %v2371
    %v2377 = vperm.slane %v478, 0
    %v2378 = vmul.f32 %v2377, %v2373
    %v2379 = vmul.f32 %v2377, %v2374
    %v2380 = vadd.f32 %v217, %v2378
    %v2381 = vadd.f32 %v218, %v2379
    %2382 = vst [vmem:[#allocation19] sm:$0xff] %v2380
    %2383 = vst [vmem:[#allocation19 + $0x8] sm:$0xff] %v2381
    %v2384 = vperm.slane %v478, 1
    %v2385 = vmul.f32 %v2384, %v2375
    %v2386 = vmul.f32 %v2384, %v2376
    %v2387 = vadd.f32 %v219, %v2385
    %v2388 = vadd.f32 %v220, %v2386
    %s2389 = scalar_lea.vmem [#allocation19], 16
    %2390 = vst [vmem:[%s2389] sm:$0xff] %v2387
    %2391 = vst [vmem:[%s2389 + $0x8] sm:$0xff] %v2388
    // Predicated region
    $region114: #{tpu_custom_call.1} parent=1 // pred_check
      _
    $region115: #{tpu_custom_call.1} parent=1 // pred_check_branch
      %2393 = sbr.rel (0) target = $region117
    $region116: #{tpu_custom_call.1} parent=1 // pred_region
      %2395 = vsyncadd [#allocation4], 0
      %s2396 = sshll.u32 [#allocation19], 4
      %s2397 = int_to_ptr.vmem [resolvable:$true] %s2396
      %s2398 = sshll.u32 %s18, 4
      %s2399 = int_to_ptr.hbm [resolvable:$true] %s2398
      %2404 = dma.vmem_to_hbm [thread:$0]  %s2397, 512, %s2399, [#allocation4], 128, 128, 8
    $region117: #{tpu_custom_call.1} parent=1 // pred_fallthru
      _
    // Predicated region
    $region118: #{tpu_custom_call.1} parent=1 // pred_check
      _
    $region119: #{tpu_custom_call.1} parent=1 // pred_check_branch
      %2406 = sbr.rel (0) target = $region121
    $region120: #{tpu_custom_call.1} parent=1 // pred_region
      %2408 = dma.done [#allocation4], 512
    $region121: #{tpu_custom_call.1} parent=1 // pred_fallthru
      _
    %2409 = vsyncpa [#allocation3], 1
    %2410 = vsyncpa [#allocation6], 1
    %2411 = vsyncpa [#allocation9], 1
    %2412 = vsyncpa [#allocation12], 1
    %2413 = vsyncpa [#allocation15], 1
    %2414 = vsyncpa [#allocation18], 1
    %2415 = vsyncpa [#allocation4], 1

</llo_original>
